<compile_context>
chip_gen: v7x
topology: tpu7x:2x2x1
jax: 0.10.0
libtpu: 0.0.40
codegen_flags: <defaults>
</compile_context>

<pallas_src>
import jax
import jax.numpy as jnp
from jax.experimental import pallas as pl
from jax.experimental.pallas import tpu as pltpu

LAYER_NORM_EPS = 1e-12
_ROW_ALIGN = 16   # tile row alignment (covers f32 (8,·) and bf16 (16,·) sublane packing)
_UNROLL = 8       # DMA-start issue unroll factor


def _round_up(x, m):
    return ((x + m - 1) // m) * m


def prepare_embedding_params(params, *, table_dtype=jnp.float32):
    """One-time preparation (call at param-load time, NOT per forward call).

    word_embeddings and gnn_token_embeddings are indexed by the same ids, so
    they are pre-summed into a single (V, H) table here; lookup tables are cast
    to their storage dtype (f32 for exact parity, bf16 to halve gather bytes).
    """
    vocab_table = (params["word_embeddings"].astype(jnp.float32)
                   + params["gnn_token_embeddings"].astype(jnp.float32)
                   ).astype(table_dtype)
    return {
        "vocab_table": vocab_table,                                            # (V, H)
        "position_table": params["position_embeddings"].astype(table_dtype),   # (P, H)
        "type_table": params["token_type_embeddings"].astype(table_dtype),     # (T, H)
        "ln_gamma": params["ln_gamma"].reshape(1, -1).astype(jnp.float32),     # (1, H)
        "ln_beta": params["ln_beta"].reshape(1, -1).astype(jnp.float32),       # (1, H)
    }


def bert_embeddings_kernel(ids_ref,        # (n_rows,) int32, SMEM (scalar prefetch)
                           vocab_hbm,      # (V, H)  table_dtype, HBM (pl.ANY)
                           typeid_ref,     # (tile_s, 1) int32, VMEM (per tile)
                           pos_slab_ref,   # (tile_s, H) table_dtype, VMEM (per tile)
                           w_type_ref,     # (T, H) table_dtype, VMEM resident
                           gamma_ref,      # (1, H) f32, VMEM resident
                           beta_ref,       # (1, H) f32, VMEM resident
                           out_ref,        # (tile_s, H) out_dtype
                           gather_buf,     # (2 * tile_s, H) table_dtype scratch
                           sem):           # DMA semaphores, shape (2,)
    c = pl.program_id(0)                   # core-split index ("parallel")
    j = pl.program_id(1)                   # tile index within this core ("arbitrary")
    tiles_per_core = pl.num_programs(1)

    two_tiles, hidden = gather_buf.shape
    tile_s = two_tiles // 2
    n_types = w_type_ref.shape[0]

    def issue_tile(tile_idx, slot):
        """Start one row-DMA per token of `tile_idx` into buffer half `slot`."""
        base = tile_idx * tile_s
        dst0 = slot * tile_s

        @pl.loop(0, tile_s // _UNROLL)
        def _issue(chunk):
            r0 = pl.multiple_of(chunk * _UNROLL, _UNROLL)
            for u in range(_UNROLL):        # unrolled: LLO can co-issue sld + descriptors
                r = r0 + u
                row = ids_ref[base + r]
                pltpu.make_async_copy(
                    vocab_hbm.at[pl.ds(row, 1), :],
                    gather_buf.at[pl.ds(dst0 + r, 1), :],
                    sem.at[slot],
                ).start()

    # Prime the pipeline: the first tile handled by this core goes into slot 0.
    @pl.when(j == 0)
    def _prime():
        issue_tile(c * tiles_per_core, 0)

    # Prefetch the next tile into the other slot; its latency hides behind this
    # tile's wait/compute/writeback.
    @pl.when(j + 1 < tiles_per_core)
    def _prefetch():
        issue_tile(c * tiles_per_core + j + 1, (j + 1) % 2)

    # One aggregate wait covering all tile_s row copies of the current slot
    # (byte count of the dummy descriptor == sum of the per-row signals).
    slot = j % 2
    dst0 = pl.multiple_of(slot * tile_s, tile_s)
    pltpu.make_async_copy(
        vocab_hbm.at[pl.ds(0, tile_s), :],
        gather_buf.at[pl.ds(dst0, tile_s), :],
        sem.at[slot],
    ).wait()

    # ---- compute (all math in f32) ----
    emb = gather_buf[pl.ds(dst0, tile_s), :].astype(jnp.float32)     # word + gnn rows
    emb = emb + pos_slab_ref[...].astype(jnp.float32)                # position rows

    # Token-type lookup: T-way select over the tiny table (no one-hot matmul).
    t_ids = typeid_ref[...]                                           # (tile_s, 1) int32
    typ = w_type_ref[pl.ds(0, 1), :].astype(jnp.float32)              # (1, H)
    for t in range(1, n_types):
        typ = jnp.where(t_ids == t,
                        w_type_ref[pl.ds(t, 1), :].astype(jnp.float32),
                        typ)
    emb = emb + typ

    # LayerNorm over the hidden axis.
    inv_h = 1.0 / hidden
    mean = jnp.sum(emb, axis=-1, keepdims=True) * inv_h
    centered = emb - mean
    var = jnp.sum(centered * centered, axis=-1, keepdims=True) * inv_h
    inv = jax.lax.rsqrt(var + LAYER_NORM_EPS)
    out = centered * inv * gamma_ref[...] + beta_ref[...]

    # Dropout: identity (eval mode).
    out_ref[...] = out.astype(out_ref.dtype)


def bert_embeddings(prepared, input_ids, token_type_ids=None, position_ids=None,
                    *, tile_rows=512, out_dtype=jnp.float32, num_core_splits=2):
    """input_ids/token_type_ids/position_ids: (B, S) int. Returns (B, S, H)."""
    vocab = prepared["vocab_table"]
    pos_table = prepared["position_table"]
    type_table = prepared["type_table"]
    gamma = prepared["ln_gamma"]
    beta = prepared["ln_beta"]
    V, H = vocab.shape
    P = pos_table.shape[0]
    table_dtype = vocab.dtype

    B, S = input_ids.shape

    # Tile rows, aligned so f32/bf16 sublane packing and the unroll factor divide evenly.
    tile_s = max(_ROW_ALIGN,
                 min(_round_up(tile_rows, _ROW_ALIGN), _round_up(S, _ROW_ALIGN)))
    assert V >= tile_s, "vocab table must have at least tile_s rows"
    s_pad = _round_up(S, tile_s)
    num_s_tiles = s_pad // tile_s

    total_tiles = B * num_s_tiles
    tiles_padded = _round_up(max(total_tiles, 1), num_core_splits)
    tiles_per_core = tiles_padded // num_core_splits
    n_rows = tiles_padded * tile_s

    def _pad_flat(x2d):
        x = jnp.zeros((B, s_pad), jnp.int32).at[:, :S].set(x2d.astype(jnp.int32))
        x = x.reshape(B * s_pad)
        return jnp.zeros((n_rows,), jnp.int32).at[:B * s_pad].set(x)

    ids_flat = _pad_flat(input_ids)
    if token_type_ids is None:
        type_flat = jnp.zeros((n_rows, 1), jnp.int32)
    else:
        type_flat = _pad_flat(token_type_ids)[:, None]

    if position_ids is None:
        # Default arange(S) positions: feed a windowed slab of the (padded)
        # position table directly via BlockSpec -- no per-token position gather.
        pos_src = jnp.zeros((s_pad, H), table_dtype).at[:min(P, s_pad)].set(
            pos_table[:s_pad].astype(table_dtype))
        pos_index_map = lambda c, j, ids: ((c * tiles_per_core + j) % num_s_tiles, 0)
    else:
        # Arbitrary position ids: pre-gather the rows once with XLA (O(N*H))
        # and stream them tile-by-tile. Still no in-kernel one-hot matmul.
        pe = jnp.take(pos_table, position_ids.astype(jnp.int32), axis=0)     # (B, S, H)
        pe = jnp.zeros((B, s_pad, H), table_dtype).at[:, :S].set(pe.astype(table_dtype))
        pos_src = jnp.zeros((n_rows, H), table_dtype).at[:B * s_pad].set(
            pe.reshape(B * s_pad, H))
        pos_index_map = lambda c, j, ids: (c * tiles_per_core + j, 0)

    grid_spec = pltpu.PrefetchScalarGridSpec(
        num_scalar_prefetch=1,
        grid=(num_core_splits, tiles_per_core),
        in_specs=[
            pl.BlockSpec(memory_space=pl.ANY),                                  # vocab (HBM)
            pl.BlockSpec((tile_s, 1), lambda c, j, ids: (c * tiles_per_core + j, 0)),
            pl.BlockSpec((tile_s, H), pos_index_map),                           # position slab
            pl.BlockSpec(type_table.shape, lambda c, j, ids: (0, 0)),           # type table
            pl.BlockSpec((1, H), lambda c, j, ids: (0, 0)),                     # gamma
            pl.BlockSpec((1, H), lambda c, j, ids: (0, 0)),                     # beta
        ],
        out_specs=pl.BlockSpec((tile_s, H), lambda c, j, ids: (c * tiles_per_core + j, 0)),
        scratch_shapes=[
            pltpu.VMEM((2 * tile_s, H), table_dtype),   # double-buffered gather rows
            pltpu.SemaphoreType.DMA((2,)),
        ],
    )

    out = pl.pallas_call(
        bert_embeddings_kernel,
        out_shape=jax.ShapeDtypeStruct((n_rows, H), out_dtype),
        grid_spec=grid_spec,
        compiler_params=pltpu.CompilerParams(
            dimension_semantics=("parallel", "arbitrary"),
            vmem_limit_bytes=32 * 1024 * 1024,
        ),
    )(ids_flat, vocab, type_flat, pos_src, type_table, gamma, beta)

    return out[:B * s_pad].reshape(B, s_pad, H)[:, :S, :]


def init_params(key, vocab_size, hidden_size, max_position_embeddings,
                type_vocab_size, pad_token_id):
    ks = jax.random.split(key, 4)
    std = 0.02
    w_word = std * jax.random.normal(ks[0], (vocab_size, hidden_size), jnp.float32)
    # nn.Embedding(padding_idx=pad_token_id) zeroes the pad row at init.
    w_word = w_word.at[pad_token_id].set(0.0)
    w_pos = std * jax.random.normal(ks[1], (max_position_embeddings, hidden_size), jnp.float32)
    w_type = std * jax.random.normal(ks[2], (type_vocab_size, hidden_size), jnp.float32)
    w_gnn = std * jax.random.normal(ks[3], (vocab_size, hidden_size), jnp.float32)
    return {
        "word_embeddings": w_word,
        "position_embeddings": w_pos,
        "token_type_embeddings": w_type,
        "gnn_token_embeddings": w_gnn,
        "ln_gamma": jnp.ones((hidden_size,), jnp.float32),
        "ln_beta": jnp.zeros((hidden_size,), jnp.float32),
    }


if __name__ == "__main__":
    vocab_size = 64
    hidden_size = 32
    max_position_embeddings = 16
    type_vocab_size = 2
    pad_token_id = 0
    # 4 sequences -> 4 row tiles -> 2 tiles per core split: exercises both the
    # pipeline prime (j == 0) and the cross-tile prefetch path.
    B, S = 4, 8

    key = jax.random.PRNGKey(0)
    kp, ki, kt, kpos = jax.random.split(key, 4)
    params = init_params(kp, vocab_size, hidden_size, max_position_embeddings,
                         type_vocab_size, pad_token_id)
    prepared_f32 = prepare_embedding_params(params)          # once, at load time

    input_ids = jax.random.randint(ki, (B, S), 0, vocab_size, dtype=jnp.int32)

    def reference(ids, typ, pos):
        emb = (params["word_embeddings"][ids]
               + params["gnn_token_embeddings"][ids]
               + params["position_embeddings"][pos]
               + params["token_type_embeddings"][typ])
        mu = emb.mean(-1, keepdims=True)
        var = ((emb - mu) ** 2).mean(-1, keepdims=True)
        return ((emb - mu) / jnp.sqrt(var + LAYER_NORM_EPS)
                * params["ln_gamma"] + params["ln_beta"])

    # 1) Module defaults: token_type_ids = zeros, position_ids = arange(S).
    out = bert_embeddings(prepared_f32, input_ids)
    jax.block_until_ready(out)
    pos_default = jnp.broadcast_to(jnp.arange(S, dtype=jnp.int32)[None, :], (B, S))
    typ_default = jnp.zeros((B, S), jnp.int32)
    ref = reference(input_ids, typ_default, pos_default)
    assert out.shape == (B, S, hidden_size)
    assert jnp.allclose(out, ref, atol=1e-5, rtol=1e-5)

    # 2) Explicit token_type_ids / position_ids (non-default lookup paths).
    token_type_ids = jax.random.randint(kt, (B, S), 0, type_vocab_size, dtype=jnp.int32)
    position_ids = jax.random.randint(kpos, (B, S), 0, max_position_embeddings, dtype=jnp.int32)
    out2 = bert_embeddings(prepared_f32, input_ids, token_type_ids, position_ids)
    jax.block_until_ready(out2)
    ref2 = reference(input_ids, token_type_ids, position_ids)
    assert jnp.allclose(out2, ref2, atol=1e-5, rtol=1e-5)

    # 3) bf16 table storage (halved gather bytes / VMEM); LayerNorm stays f32.
    prepared_bf16 = prepare_embedding_params(params, table_dtype=jnp.bfloat16)
    out3 = bert_embeddings(prepared_bf16, input_ids)
    jax.block_until_ready(out3)
    assert jnp.allclose(out3, ref, atol=7e-2, rtol=7e-2)

    print("KERNEL_OK")
</pallas_src>

<mosaic_0001>
module attributes {stable_mosaic.version = 11 : i64} {
  func.func @bert_embeddings_kernel(%arg0: i32, %arg1: i32, %arg2: memref<64xi32, #tpu.memory_space<smem>>, %arg3: memref<64x32xf32, #tpu.memory_space<any>>, %arg4: memref<16x1xi32, #tpu.memory_space<vmem>>, %arg5: memref<16x32xf32, #tpu.memory_space<vmem>>, %arg6: memref<2x32xf32, #tpu.memory_space<vmem>>, %arg7: memref<1x32xf32, #tpu.memory_space<vmem>>, %arg8: memref<1x32xf32, #tpu.memory_space<vmem>>, %arg9: memref<16x32xf32, #tpu.memory_space<vmem>>, %arg10: memref<32x32xf32, #tpu.memory_space<vmem>>, %arg11: memref<2x!tpu.dma_semaphore, #tpu.memory_space<semaphore_mem>>) attributes {dimension_semantics = [#tpu.dimension_semantics<parallel>, #tpu.dimension_semantics<arbitrary>], iteration_bounds = array<i64: 2, 2>, scalar_prefetch = 1 : i64, scratch_operands = 2 : i64, tpu.core_type = #tpu.core_type<tc>, window_params = [{}, {transform_indices = @transform_1, window_bounds = array<i64: 16, 1>}, {transform_indices = @transform_2, window_bounds = array<i64: 16, 32>}, {pipeline_mode = #tpu.pipeline_mode<synchronous>, transform_indices = @transform_3, window_bounds = array<i64: 2, 32>}, {pipeline_mode = #tpu.pipeline_mode<synchronous>, transform_indices = @transform_4, window_bounds = array<i64: 1, 32>}, {pipeline_mode = #tpu.pipeline_mode<synchronous>, transform_indices = @transform_5, window_bounds = array<i64: 1, 32>}, {transform_indices = @transform_6, window_bounds = array<i64: 16, 32>}]} {
    %c0_i32 = arith.constant 0 : i32
    %0 = arith.cmpi eq, %arg1, %c0_i32 : i32
    %1 = arith.extui %0 : i1 to i32
    %c0_i32_0 = arith.constant 0 : i32
    %2 = arith.cmpi ne, %1, %c0_i32_0 : i32
    scf.if %2 {
      %c2_i32_29 = arith.constant 2 : i32
      %63 = arith.muli %arg0, %c2_i32_29 : i32
      %c16_i32_30 = arith.constant 16 : i32
      %64 = arith.muli %63, %c16_i32_30 : i32
      %c0_i32_31 = arith.constant 0 : i32
      %c2_i32_32 = arith.constant 2 : i32
      %65 = arith.addi %c0_i32_31, %c2_i32_32 : i32
      %c1_i32_33 = arith.constant 1 : i32
      scf.for %arg12 = %c0_i32_31 to %65 step %c1_i32_33  : i32 {
        %c1_i32_35 = arith.constant 1 : i32
        %66 = arith.muli %arg12, %c1_i32_35 : i32
        %c0_i32_36 = arith.constant 0 : i32
        %67 = arith.addi %c0_i32_36, %66 : i32
        %c8_i32 = arith.constant 8 : i32
        %68 = arith.muli %67, %c8_i32 : i32
        %69 = tpu.assume_multiple %68, 8 : i32
        %c0_i32_37 = arith.constant 0 : i32
        %70 = arith.addi %69, %c0_i32_37 : i32
        %71 = arith.addi %64, %70 : i32
        %72 = arith.index_cast %71 : i32 to index
        %73 = memref.load %arg2[%72] : memref<64xi32, #tpu.memory_space<smem>>
        %c0_i32_38 = arith.constant 0 : i32
        %74 = arith.addi %c0_i32_38, %70 : i32
        %c0_i32_39 = arith.constant 0 : i32
        %c0_i32_40 = arith.constant 0 : i32
        %75 = tpu.memref_slice %arg3[%73, %c0_i32_40] : memref<64x32xf32, #tpu.memory_space<any>> -> memref<1x32xf32, #tpu.memory_space<any>>
        %c0_i32_41 = arith.constant 0 : i32
        %76 = tpu.memref_slice %arg10[%74, %c0_i32_41] : memref<32x32xf32, #tpu.memory_space<vmem>> -> memref<1x32xf32, #tpu.memory_space<vmem>>
        %77 = tpu.memref_slice %arg11[%c0_i32_39] : memref<2x!tpu.dma_semaphore, #tpu.memory_space<semaphore_mem>> -> memref<1x!tpu.dma_semaphore, #tpu.memory_space<semaphore_mem>>
        %78 = tpu.memref_squeeze %77 : memref<1x!tpu.dma_semaphore, #tpu.memory_space<semaphore_mem>> -> memref<!tpu.dma_semaphore, #tpu.memory_space<semaphore_mem>>
        tpu.enqueue_dma source(%75 : memref<1x32xf32, #tpu.memory_space<any>>) target(%76 : memref<1x32xf32, #tpu.memory_space<vmem>>) target_semaphore(%78 : memref<!tpu.dma_semaphore, #tpu.memory_space<semaphore_mem>>)
        %c1_i32_42 = arith.constant 1 : i32
        %79 = arith.addi %69, %c1_i32_42 : i32
        %80 = arith.addi %64, %79 : i32
        %81 = arith.index_cast %80 : i32 to index
        %82 = memref.load %arg2[%81] : memref<64xi32, #tpu.memory_space<smem>>
        %c0_i32_43 = arith.constant 0 : i32
        %83 = arith.addi %c0_i32_43, %79 : i32
        %c0_i32_44 = arith.constant 0 : i32
        %c0_i32_45 = arith.constant 0 : i32
        %84 = tpu.memref_slice %arg3[%82, %c0_i32_45] : memref<64x32xf32, #tpu.memory_space<any>> -> memref<1x32xf32, #tpu.memory_space<any>>
        %c0_i32_46 = arith.constant 0 : i32
        %85 = tpu.memref_slice %arg10[%83, %c0_i32_46] : memref<32x32xf32, #tpu.memory_space<vmem>> -> memref<1x32xf32, #tpu.memory_space<vmem>>
        %86 = tpu.memref_slice %arg11[%c0_i32_44] : memref<2x!tpu.dma_semaphore, #tpu.memory_space<semaphore_mem>> -> memref<1x!tpu.dma_semaphore, #tpu.memory_space<semaphore_mem>>
        %87 = tpu.memref_squeeze %86 : memref<1x!tpu.dma_semaphore, #tpu.memory_space<semaphore_mem>> -> memref<!tpu.dma_semaphore, #tpu.memory_space<semaphore_mem>>
        tpu.enqueue_dma source(%84 : memref<1x32xf32, #tpu.memory_space<any>>) target(%85 : memref<1x32xf32, #tpu.memory_space<vmem>>) target_semaphore(%87 : memref<!tpu.dma_semaphore, #tpu.memory_space<semaphore_mem>>)
        %c2_i32_47 = arith.constant 2 : i32
        %88 = arith.addi %69, %c2_i32_47 : i32
        %89 = arith.addi %64, %88 : i32
        %90 = arith.index_cast %89 : i32 to index
        %91 = memref.load %arg2[%90] : memref<64xi32, #tpu.memory_space<smem>>
        %c0_i32_48 = arith.constant 0 : i32
        %92 = arith.addi %c0_i32_48, %88 : i32
        %c0_i32_49 = arith.constant 0 : i32
        %c0_i32_50 = arith.constant 0 : i32
        %93 = tpu.memref_slice %arg3[%91, %c0_i32_50] : memref<64x32xf32, #tpu.memory_space<any>> -> memref<1x32xf32, #tpu.memory_space<any>>
        %c0_i32_51 = arith.constant 0 : i32
        %94 = tpu.memref_slice %arg10[%92, %c0_i32_51] : memref<32x32xf32, #tpu.memory_space<vmem>> -> memref<1x32xf32, #tpu.memory_space<vmem>>
        %95 = tpu.memref_slice %arg11[%c0_i32_49] : memref<2x!tpu.dma_semaphore, #tpu.memory_space<semaphore_mem>> -> memref<1x!tpu.dma_semaphore, #tpu.memory_space<semaphore_mem>>
        %96 = tpu.memref_squeeze %95 : memref<1x!tpu.dma_semaphore, #tpu.memory_space<semaphore_mem>> -> memref<!tpu.dma_semaphore, #tpu.memory_space<semaphore_mem>>
        tpu.enqueue_dma source(%93 : memref<1x32xf32, #tpu.memory_space<any>>) target(%94 : memref<1x32xf32, #tpu.memory_space<vmem>>) target_semaphore(%96 : memref<!tpu.dma_semaphore, #tpu.memory_space<semaphore_mem>>)
        %c3_i32 = arith.constant 3 : i32
        %97 = arith.addi %69, %c3_i32 : i32
        %98 = arith.addi %64, %97 : i32
        %99 = arith.index_cast %98 : i32 to index
        %100 = memref.load %arg2[%99] : memref<64xi32, #tpu.memory_space<smem>>
        %c0_i32_52 = arith.constant 0 : i32
        %101 = arith.addi %c0_i32_52, %97 : i32
        %c0_i32_53 = arith.constant 0 : i32
        %c0_i32_54 = arith.constant 0 : i32
        %102 = tpu.memref_slice %arg3[%100, %c0_i32_54] : memref<64x32xf32, #tpu.memory_space<any>> -> memref<1x32xf32, #tpu.memory_space<any>>
        %c0_i32_55 = arith.constant 0 : i32
        %103 = tpu.memref_slice %arg10[%101, %c0_i32_55] : memref<32x32xf32, #tpu.memory_space<vmem>> -> memref<1x32xf32, #tpu.memory_space<vmem>>
        %104 = tpu.memref_slice %arg11[%c0_i32_53] : memref<2x!tpu.dma_semaphore, #tpu.memory_space<semaphore_mem>> -> memref<1x!tpu.dma_semaphore, #tpu.memory_space<semaphore_mem>>
        %105 = tpu.memref_squeeze %104 : memref<1x!tpu.dma_semaphore, #tpu.memory_space<semaphore_mem>> -> memref<!tpu.dma_semaphore, #tpu.memory_space<semaphore_mem>>
        tpu.enqueue_dma source(%102 : memref<1x32xf32, #tpu.memory_space<any>>) target(%103 : memref<1x32xf32, #tpu.memory_space<vmem>>) target_semaphore(%105 : memref<!tpu.dma_semaphore, #tpu.memory_space<semaphore_mem>>)
        %c4_i32 = arith.constant 4 : i32
        %106 = arith.addi %69, %c4_i32 : i32
        %107 = arith.addi %64, %106 : i32
        %108 = arith.index_cast %107 : i32 to index
        %109 = memref.load %arg2[%108] : memref<64xi32, #tpu.memory_space<smem>>
        %c0_i32_56 = arith.constant 0 : i32
        %110 = arith.addi %c0_i32_56, %106 : i32
        %c0_i32_57 = arith.constant 0 : i32
        %c0_i32_58 = arith.constant 0 : i32
        %111 = tpu.memref_slice %arg3[%109, %c0_i32_58] : memref<64x32xf32, #tpu.memory_space<any>> -> memref<1x32xf32, #tpu.memory_space<any>>
        %c0_i32_59 = arith.constant 0 : i32
        %112 = tpu.memref_slice %arg10[%110, %c0_i32_59] : memref<32x32xf32, #tpu.memory_space<vmem>> -> memref<1x32xf32, #tpu.memory_space<vmem>>
        %113 = tpu.memref_slice %arg11[%c0_i32_57] : memref<2x!tpu.dma_semaphore, #tpu.memory_space<semaphore_mem>> -> memref<1x!tpu.dma_semaphore, #tpu.memory_space<semaphore_mem>>
        %114 = tpu.memref_squeeze %113 : memref<1x!tpu.dma_semaphore, #tpu.memory_space<semaphore_mem>> -> memref<!tpu.dma_semaphore, #tpu.memory_space<semaphore_mem>>
        tpu.enqueue_dma source(%111 : memref<1x32xf32, #tpu.memory_space<any>>) target(%112 : memref<1x32xf32, #tpu.memory_space<vmem>>) target_semaphore(%114 : memref<!tpu.dma_semaphore, #tpu.memory_space<semaphore_mem>>)
        %c5_i32 = arith.constant 5 : i32
        %115 = arith.addi %69, %c5_i32 : i32
        %116 = arith.addi %64, %115 : i32
        %117 = arith.index_cast %116 : i32 to index
        %118 = memref.load %arg2[%117] : memref<64xi32, #tpu.memory_space<smem>>
        %c0_i32_60 = arith.constant 0 : i32
        %119 = arith.addi %c0_i32_60, %115 : i32
        %c0_i32_61 = arith.constant 0 : i32
        %c0_i32_62 = arith.constant 0 : i32
        %120 = tpu.memref_slice %arg3[%118, %c0_i32_62] : memref<64x32xf32, #tpu.memory_space<any>> -> memref<1x32xf32, #tpu.memory_space<any>>
        %c0_i32_63 = arith.constant 0 : i32
        %121 = tpu.memref_slice %arg10[%119, %c0_i32_63] : memref<32x32xf32, #tpu.memory_space<vmem>> -> memref<1x32xf32, #tpu.memory_space<vmem>>
        %122 = tpu.memref_slice %arg11[%c0_i32_61] : memref<2x!tpu.dma_semaphore, #tpu.memory_space<semaphore_mem>> -> memref<1x!tpu.dma_semaphore, #tpu.memory_space<semaphore_mem>>
        %123 = tpu.memref_squeeze %122 : memref<1x!tpu.dma_semaphore, #tpu.memory_space<semaphore_mem>> -> memref<!tpu.dma_semaphore, #tpu.memory_space<semaphore_mem>>
        tpu.enqueue_dma source(%120 : memref<1x32xf32, #tpu.memory_space<any>>) target(%121 : memref<1x32xf32, #tpu.memory_space<vmem>>) target_semaphore(%123 : memref<!tpu.dma_semaphore, #tpu.memory_space<semaphore_mem>>)
        %c6_i32 = arith.constant 6 : i32
        %124 = arith.addi %69, %c6_i32 : i32
        %125 = arith.addi %64, %124 : i32
        %126 = arith.index_cast %125 : i32 to index
        %127 = memref.load %arg2[%126] : memref<64xi32, #tpu.memory_space<smem>>
        %c0_i32_64 = arith.constant 0 : i32
        %128 = arith.addi %c0_i32_64, %124 : i32
        %c0_i32_65 = arith.constant 0 : i32
        %c0_i32_66 = arith.constant 0 : i32
        %129 = tpu.memref_slice %arg3[%127, %c0_i32_66] : memref<64x32xf32, #tpu.memory_space<any>> -> memref<1x32xf32, #tpu.memory_space<any>>
        %c0_i32_67 = arith.constant 0 : i32
        %130 = tpu.memref_slice %arg10[%128, %c0_i32_67] : memref<32x32xf32, #tpu.memory_space<vmem>> -> memref<1x32xf32, #tpu.memory_space<vmem>>
        %131 = tpu.memref_slice %arg11[%c0_i32_65] : memref<2x!tpu.dma_semaphore, #tpu.memory_space<semaphore_mem>> -> memref<1x!tpu.dma_semaphore, #tpu.memory_space<semaphore_mem>>
        %132 = tpu.memref_squeeze %131 : memref<1x!tpu.dma_semaphore, #tpu.memory_space<semaphore_mem>> -> memref<!tpu.dma_semaphore, #tpu.memory_space<semaphore_mem>>
        tpu.enqueue_dma source(%129 : memref<1x32xf32, #tpu.memory_space<any>>) target(%130 : memref<1x32xf32, #tpu.memory_space<vmem>>) target_semaphore(%132 : memref<!tpu.dma_semaphore, #tpu.memory_space<semaphore_mem>>)
        %c7_i32 = arith.constant 7 : i32
        %133 = arith.addi %69, %c7_i32 : i32
        %134 = arith.addi %64, %133 : i32
        %135 = arith.index_cast %134 : i32 to index
        %136 = memref.load %arg2[%135] : memref<64xi32, #tpu.memory_space<smem>>
        %c0_i32_68 = arith.constant 0 : i32
        %137 = arith.addi %c0_i32_68, %133 : i32
        %c0_i32_69 = arith.constant 0 : i32
        %c0_i32_70 = arith.constant 0 : i32
        %138 = tpu.memref_slice %arg3[%136, %c0_i32_70] : memref<64x32xf32, #tpu.memory_space<any>> -> memref<1x32xf32, #tpu.memory_space<any>>
        %c0_i32_71 = arith.constant 0 : i32
        %139 = tpu.memref_slice %arg10[%137, %c0_i32_71] : memref<32x32xf32, #tpu.memory_space<vmem>> -> memref<1x32xf32, #tpu.memory_space<vmem>>
        %140 = tpu.memref_slice %arg11[%c0_i32_69] : memref<2x!tpu.dma_semaphore, #tpu.memory_space<semaphore_mem>> -> memref<1x!tpu.dma_semaphore, #tpu.memory_space<semaphore_mem>>
        %141 = tpu.memref_squeeze %140 : memref<1x!tpu.dma_semaphore, #tpu.memory_space<semaphore_mem>> -> memref<!tpu.dma_semaphore, #tpu.memory_space<semaphore_mem>>
        tpu.enqueue_dma source(%138 : memref<1x32xf32, #tpu.memory_space<any>>) target(%139 : memref<1x32xf32, #tpu.memory_space<vmem>>) target_semaphore(%141 : memref<!tpu.dma_semaphore, #tpu.memory_space<semaphore_mem>>)
      }
      %c2_i32_34 = arith.constant 2 : i32
    } else {
    }
    %c1_i32 = arith.constant 1 : i32
    %3 = arith.addi %arg1, %c1_i32 : i32
    %c2_i32 = arith.constant 2 : i32
    %4 = arith.cmpi slt, %3, %c2_i32 : i32
    %5 = arith.extui %4 : i1 to i32
    %c0_i32_1 = arith.constant 0 : i32
    %6 = arith.cmpi ne, %5, %c0_i32_1 : i32
    scf.if %6 {
      %c2_i32_29 = arith.constant 2 : i32
      %63 = arith.muli %arg0, %c2_i32_29 : i32
      %64 = arith.addi %63, %arg1 : i32
      %c1_i32_30 = arith.constant 1 : i32
      %65 = arith.addi %64, %c1_i32_30 : i32
      %c1_i32_31 = arith.constant 1 : i32
      %66 = arith.addi %arg1, %c1_i32_31 : i32
      %c2_i32_32 = arith.constant 2 : i32
      %c0_i32_33 = arith.constant 0 : i32
      %67 = arith.cmpi eq, %c2_i32_32, %c0_i32_33 : i32
      %c1_i32_34 = arith.constant 1 : i32
      %68 = arith.select %67, %c1_i32_34, %c2_i32_32 : i32
      %69 = arith.remsi %66, %68 : i32
      %c0_i32_35 = arith.constant 0 : i32
      %70 = arith.cmpi ne, %69, %c0_i32_35 : i32
      %c0_i32_36 = arith.constant 0 : i32
      %71 = arith.cmpi slt, %69, %c0_i32_36 : i32
      %c0_i32_37 = arith.constant 0 : i32
      %72 = arith.cmpi slt, %68, %c0_i32_37 : i32
      %73 = arith.xori %71, %72 : i1
      %74 = arith.andi %73, %70 : i1
      %75 = arith.addi %69, %68 : i32
      %76 = arith.select %74, %75, %69 : i32
      %c16_i32_38 = arith.constant 16 : i32
      %77 = arith.muli %65, %c16_i32_38 : i32
      %c16_i32_39 = arith.constant 16 : i32
      %78 = arith.muli %76, %c16_i32_39 : i32
      %c0_i32_40 = arith.constant 0 : i32
      %c2_i32_41 = arith.constant 2 : i32
      %79 = arith.addi %c0_i32_40, %c2_i32_41 : i32
      %c1_i32_42 = arith.constant 1 : i32
      scf.for %arg12 = %c0_i32_40 to %79 step %c1_i32_42  : i32 {
        %c1_i32_44 = arith.constant 1 : i32
        %80 = arith.muli %arg12, %c1_i32_44 : i32
        %c0_i32_45 = arith.constant 0 : i32
        %81 = arith.addi %c0_i32_45, %80 : i32
        %c8_i32 = arith.constant 8 : i32
        %82 = arith.muli %81, %c8_i32 : i32
        %83 = tpu.assume_multiple %82, 8 : i32
        %c0_i32_46 = arith.constant 0 : i32
        %84 = arith.addi %83, %c0_i32_46 : i32
        %85 = arith.addi %77, %84 : i32
        %86 = arith.index_cast %85 : i32 to index
        %87 = memref.load %arg2[%86] : memref<64xi32, #tpu.memory_space<smem>>
        %88 = arith.addi %78, %84 : i32
        %c0_i32_47 = arith.constant 0 : i32
        %89 = tpu.memref_slice %arg3[%87, %c0_i32_47] : memref<64x32xf32, #tpu.memory_space<any>> -> memref<1x32xf32, #tpu.memory_space<any>>
        %c0_i32_48 = arith.constant 0 : i32
        %90 = tpu.memref_slice %arg10[%88, %c0_i32_48] : memref<32x32xf32, #tpu.memory_space<vmem>> -> memref<1x32xf32, #tpu.memory_space<vmem>>
        %91 = tpu.memref_slice %arg11[%76] : memref<2x!tpu.dma_semaphore, #tpu.memory_space<semaphore_mem>> -> memref<1x!tpu.dma_semaphore, #tpu.memory_space<semaphore_mem>>
        %92 = tpu.memref_squeeze %91 : memref<1x!tpu.dma_semaphore, #tpu.memory_space<semaphore_mem>> -> memref<!tpu.dma_semaphore, #tpu.memory_space<semaphore_mem>>
        tpu.enqueue_dma source(%89 : memref<1x32xf32, #tpu.memory_space<any>>) target(%90 : memref<1x32xf32, #tpu.memory_space<vmem>>) target_semaphore(%92 : memref<!tpu.dma_semaphore, #tpu.memory_space<semaphore_mem>>)
        %c1_i32_49 = arith.constant 1 : i32
        %93 = arith.addi %83, %c1_i32_49 : i32
        %94 = arith.addi %77, %93 : i32
        %95 = arith.index_cast %94 : i32 to index
        %96 = memref.load %arg2[%95] : memref<64xi32, #tpu.memory_space<smem>>
        %97 = arith.addi %78, %93 : i32
        %c0_i32_50 = arith.constant 0 : i32
        %98 = tpu.memref_slice %arg3[%96, %c0_i32_50] : memref<64x32xf32, #tpu.memory_space<any>> -> memref<1x32xf32, #tpu.memory_space<any>>
        %c0_i32_51 = arith.constant 0 : i32
        %99 = tpu.memref_slice %arg10[%97, %c0_i32_51] : memref<32x32xf32, #tpu.memory_space<vmem>> -> memref<1x32xf32, #tpu.memory_space<vmem>>
        %100 = tpu.memref_slice %arg11[%76] : memref<2x!tpu.dma_semaphore, #tpu.memory_space<semaphore_mem>> -> memref<1x!tpu.dma_semaphore, #tpu.memory_space<semaphore_mem>>
        %101 = tpu.memref_squeeze %100 : memref<1x!tpu.dma_semaphore, #tpu.memory_space<semaphore_mem>> -> memref<!tpu.dma_semaphore, #tpu.memory_space<semaphore_mem>>
        tpu.enqueue_dma source(%98 : memref<1x32xf32, #tpu.memory_space<any>>) target(%99 : memref<1x32xf32, #tpu.memory_space<vmem>>) target_semaphore(%101 : memref<!tpu.dma_semaphore, #tpu.memory_space<semaphore_mem>>)
        %c2_i32_52 = arith.constant 2 : i32
        %102 = arith.addi %83, %c2_i32_52 : i32
        %103 = arith.addi %77, %102 : i32
        %104 = arith.index_cast %103 : i32 to index
        %105 = memref.load %arg2[%104] : memref<64xi32, #tpu.memory_space<smem>>
        %106 = arith.addi %78, %102 : i32
        %c0_i32_53 = arith.constant 0 : i32
        %107 = tpu.memref_slice %arg3[%105, %c0_i32_53] : memref<64x32xf32, #tpu.memory_space<any>> -> memref<1x32xf32, #tpu.memory_space<any>>
        %c0_i32_54 = arith.constant 0 : i32
        %108 = tpu.memref_slice %arg10[%106, %c0_i32_54] : memref<32x32xf32, #tpu.memory_space<vmem>> -> memref<1x32xf32, #tpu.memory_space<vmem>>
        %109 = tpu.memref_slice %arg11[%76] : memref<2x!tpu.dma_semaphore, #tpu.memory_space<semaphore_mem>> -> memref<1x!tpu.dma_semaphore, #tpu.memory_space<semaphore_mem>>
        %110 = tpu.memref_squeeze %109 : memref<1x!tpu.dma_semaphore, #tpu.memory_space<semaphore_mem>> -> memref<!tpu.dma_semaphore, #tpu.memory_space<semaphore_mem>>
        tpu.enqueue_dma source(%107 : memref<1x32xf32, #tpu.memory_space<any>>) target(%108 : memref<1x32xf32, #tpu.memory_space<vmem>>) target_semaphore(%110 : memref<!tpu.dma_semaphore, #tpu.memory_space<semaphore_mem>>)
        %c3_i32 = arith.constant 3 : i32
        %111 = arith.addi %83, %c3_i32 : i32
        %112 = arith.addi %77, %111 : i32
        %113 = arith.index_cast %112 : i32 to index
        %114 = memref.load %arg2[%113] : memref<64xi32, #tpu.memory_space<smem>>
        %115 = arith.addi %78, %111 : i32
        %c0_i32_55 = arith.constant 0 : i32
        %116 = tpu.memref_slice %arg3[%114, %c0_i32_55] : memref<64x32xf32, #tpu.memory_space<any>> -> memref<1x32xf32, #tpu.memory_space<any>>
        %c0_i32_56 = arith.constant 0 : i32
        %117 = tpu.memref_slice %arg10[%115, %c0_i32_56] : memref<32x32xf32, #tpu.memory_space<vmem>> -> memref<1x32xf32, #tpu.memory_space<vmem>>
        %118 = tpu.memref_slice %arg11[%76] : memref<2x!tpu.dma_semaphore, #tpu.memory_space<semaphore_mem>> -> memref<1x!tpu.dma_semaphore, #tpu.memory_space<semaphore_mem>>
        %119 = tpu.memref_squeeze %118 : memref<1x!tpu.dma_semaphore, #tpu.memory_space<semaphore_mem>> -> memref<!tpu.dma_semaphore, #tpu.memory_space<semaphore_mem>>
        tpu.enqueue_dma source(%116 : memref<1x32xf32, #tpu.memory_space<any>>) target(%117 : memref<1x32xf32, #tpu.memory_space<vmem>>) target_semaphore(%119 : memref<!tpu.dma_semaphore, #tpu.memory_space<semaphore_mem>>)
        %c4_i32 = arith.constant 4 : i32
        %120 = arith.addi %83, %c4_i32 : i32
        %121 = arith.addi %77, %120 : i32
        %122 = arith.index_cast %121 : i32 to index
        %123 = memref.load %arg2[%122] : memref<64xi32, #tpu.memory_space<smem>>
        %124 = arith.addi %78, %120 : i32
        %c0_i32_57 = arith.constant 0 : i32
        %125 = tpu.memref_slice %arg3[%123, %c0_i32_57] : memref<64x32xf32, #tpu.memory_space<any>> -> memref<1x32xf32, #tpu.memory_space<any>>
        %c0_i32_58 = arith.constant 0 : i32
        %126 = tpu.memref_slice %arg10[%124, %c0_i32_58] : memref<32x32xf32, #tpu.memory_space<vmem>> -> memref<1x32xf32, #tpu.memory_space<vmem>>
        %127 = tpu.memref_slice %arg11[%76] : memref<2x!tpu.dma_semaphore, #tpu.memory_space<semaphore_mem>> -> memref<1x!tpu.dma_semaphore, #tpu.memory_space<semaphore_mem>>
        %128 = tpu.memref_squeeze %127 : memref<1x!tpu.dma_semaphore, #tpu.memory_space<semaphore_mem>> -> memref<!tpu.dma_semaphore, #tpu.memory_space<semaphore_mem>>
        tpu.enqueue_dma source(%125 : memref<1x32xf32, #tpu.memory_space<any>>) target(%126 : memref<1x32xf32, #tpu.memory_space<vmem>>) target_semaphore(%128 : memref<!tpu.dma_semaphore, #tpu.memory_space<semaphore_mem>>)
        %c5_i32 = arith.constant 5 : i32
        %129 = arith.addi %83, %c5_i32 : i32
        %130 = arith.addi %77, %129 : i32
        %131 = arith.index_cast %130 : i32 to index
        %132 = memref.load %arg2[%131] : memref<64xi32, #tpu.memory_space<smem>>
        %133 = arith.addi %78, %129 : i32
        %c0_i32_59 = arith.constant 0 : i32
        %134 = tpu.memref_slice %arg3[%132, %c0_i32_59] : memref<64x32xf32, #tpu.memory_space<any>> -> memref<1x32xf32, #tpu.memory_space<any>>
        %c0_i32_60 = arith.constant 0 : i32
        %135 = tpu.memref_slice %arg10[%133, %c0_i32_60] : memref<32x32xf32, #tpu.memory_space<vmem>> -> memref<1x32xf32, #tpu.memory_space<vmem>>
        %136 = tpu.memref_slice %arg11[%76] : memref<2x!tpu.dma_semaphore, #tpu.memory_space<semaphore_mem>> -> memref<1x!tpu.dma_semaphore, #tpu.memory_space<semaphore_mem>>
        %137 = tpu.memref_squeeze %136 : memref<1x!tpu.dma_semaphore, #tpu.memory_space<semaphore_mem>> -> memref<!tpu.dma_semaphore, #tpu.memory_space<semaphore_mem>>
        tpu.enqueue_dma source(%134 : memref<1x32xf32, #tpu.memory_space<any>>) target(%135 : memref<1x32xf32, #tpu.memory_space<vmem>>) target_semaphore(%137 : memref<!tpu.dma_semaphore, #tpu.memory_space<semaphore_mem>>)
        %c6_i32 = arith.constant 6 : i32
        %138 = arith.addi %83, %c6_i32 : i32
        %139 = arith.addi %77, %138 : i32
        %140 = arith.index_cast %139 : i32 to index
        %141 = memref.load %arg2[%140] : memref<64xi32, #tpu.memory_space<smem>>
        %142 = arith.addi %78, %138 : i32
        %c0_i32_61 = arith.constant 0 : i32
        %143 = tpu.memref_slice %arg3[%141, %c0_i32_61] : memref<64x32xf32, #tpu.memory_space<any>> -> memref<1x32xf32, #tpu.memory_space<any>>
        %c0_i32_62 = arith.constant 0 : i32
        %144 = tpu.memref_slice %arg10[%142, %c0_i32_62] : memref<32x32xf32, #tpu.memory_space<vmem>> -> memref<1x32xf32, #tpu.memory_space<vmem>>
        %145 = tpu.memref_slice %arg11[%76] : memref<2x!tpu.dma_semaphore, #tpu.memory_space<semaphore_mem>> -> memref<1x!tpu.dma_semaphore, #tpu.memory_space<semaphore_mem>>
        %146 = tpu.memref_squeeze %145 : memref<1x!tpu.dma_semaphore, #tpu.memory_space<semaphore_mem>> -> memref<!tpu.dma_semaphore, #tpu.memory_space<semaphore_mem>>
        tpu.enqueue_dma source(%143 : memref<1x32xf32, #tpu.memory_space<any>>) target(%144 : memref<1x32xf32, #tpu.memory_space<vmem>>) target_semaphore(%146 : memref<!tpu.dma_semaphore, #tpu.memory_space<semaphore_mem>>)
        %c7_i32 = arith.constant 7 : i32
        %147 = arith.addi %83, %c7_i32 : i32
        %148 = arith.addi %77, %147 : i32
        %149 = arith.index_cast %148 : i32 to index
        %150 = memref.load %arg2[%149] : memref<64xi32, #tpu.memory_space<smem>>
        %151 = arith.addi %78, %147 : i32
        %c0_i32_63 = arith.constant 0 : i32
        %152 = tpu.memref_slice %arg3[%150, %c0_i32_63] : memref<64x32xf32, #tpu.memory_space<any>> -> memref<1x32xf32, #tpu.memory_space<any>>
        %c0_i32_64 = arith.constant 0 : i32
        %153 = tpu.memref_slice %arg10[%151, %c0_i32_64] : memref<32x32xf32, #tpu.memory_space<vmem>> -> memref<1x32xf32, #tpu.memory_space<vmem>>
        %154 = tpu.memref_slice %arg11[%76] : memref<2x!tpu.dma_semaphore, #tpu.memory_space<semaphore_mem>> -> memref<1x!tpu.dma_semaphore, #tpu.memory_space<semaphore_mem>>
        %155 = tpu.memref_squeeze %154 : memref<1x!tpu.dma_semaphore, #tpu.memory_space<semaphore_mem>> -> memref<!tpu.dma_semaphore, #tpu.memory_space<semaphore_mem>>
        tpu.enqueue_dma source(%152 : memref<1x32xf32, #tpu.memory_space<any>>) target(%153 : memref<1x32xf32, #tpu.memory_space<vmem>>) target_semaphore(%155 : memref<!tpu.dma_semaphore, #tpu.memory_space<semaphore_mem>>)
      }
      %c2_i32_43 = arith.constant 2 : i32
    } else {
    }
    %c2_i32_2 = arith.constant 2 : i32
    %c0_i32_3 = arith.constant 0 : i32
    %7 = arith.cmpi eq, %c2_i32_2, %c0_i32_3 : i32
    %c1_i32_4 = arith.constant 1 : i32
    %8 = arith.select %7, %c1_i32_4, %c2_i32_2 : i32
    %9 = arith.remsi %arg1, %8 : i32
    %c0_i32_5 = arith.constant 0 : i32
    %10 = arith.cmpi ne, %9, %c0_i32_5 : i32
    %c0_i32_6 = arith.constant 0 : i32
    %11 = arith.cmpi slt, %9, %c0_i32_6 : i32
    %c0_i32_7 = arith.constant 0 : i32
    %12 = arith.cmpi slt, %8, %c0_i32_7 : i32
    %13 = arith.xori %11, %12 : i1
    %14 = arith.andi %13, %10 : i1
    %15 = arith.addi %9, %8 : i32
    %16 = arith.select %14, %15, %9 : i32
    %c16_i32 = arith.constant 16 : i32
    %17 = arith.muli %16, %c16_i32 : i32
    %18 = tpu.assume_multiple %17, 16 : i32
    %c0_i32_8 = arith.constant 0 : i32
    %c0_i32_9 = arith.constant 0 : i32
    %19 = tpu.memref_slice %arg3[%c0_i32_8, %c0_i32_9] : memref<64x32xf32, #tpu.memory_space<any>> -> memref<16x32xf32, #tpu.memory_space<any>>
    %c0_i32_10 = arith.constant 0 : i32
    %20 = tpu.memref_slice %arg10[%18, %c0_i32_10] : memref<32x32xf32, #tpu.memory_space<vmem>> -> memref<16x32xf32, #tpu.memory_space<vmem>>
    %21 = tpu.memref_slice %arg11[%16] : memref<2x!tpu.dma_semaphore, #tpu.memory_space<semaphore_mem>> -> memref<1x!tpu.dma_semaphore, #tpu.memory_space<semaphore_mem>>
    %22 = tpu.memref_squeeze %21 : memref<1x!tpu.dma_semaphore, #tpu.memory_space<semaphore_mem>> -> memref<!tpu.dma_semaphore, #tpu.memory_space<semaphore_mem>>
    tpu.wait_dma2 semaphore(%22 : memref<!tpu.dma_semaphore, #tpu.memory_space<semaphore_mem>>) src(%19 : memref<16x32xf32, #tpu.memory_space<any>>) dst(%20 : memref<16x32xf32, #tpu.memory_space<vmem>>)
    %23 = arith.index_cast %18 : i32 to index
    %c0 = arith.constant 0 : index
    %24 = vector.load %arg10[%23, %c0] : memref<32x32xf32, #tpu.memory_space<vmem>>, vector<16x32xf32>
    %c0_11 = arith.constant 0 : index
    %c0_12 = arith.constant 0 : index
    %25 = vector.load %arg5[%c0_11, %c0_12] : memref<16x32xf32, #tpu.memory_space<vmem>>, vector<16x32xf32>
    %26 = arith.addf %24, %25 : vector<16x32xf32>
    %c0_13 = arith.constant 0 : index
    %c0_14 = arith.constant 0 : index
    %27 = vector.load %arg4[%c0_13, %c0_14] : memref<16x1xi32, #tpu.memory_space<vmem>>, vector<16x1xi32>
    %c0_15 = arith.constant 0 : index
    %c0_16 = arith.constant 0 : index
    %28 = vector.load %arg6[%c0_15, %c0_16] : memref<2x32xf32, #tpu.memory_space<vmem>>, vector<1x32xf32>
    %c1_i32_17 = arith.constant 1 : i32
    %29 = vector.broadcast %c1_i32_17 : i32 to vector<16x1xi32>
    %30 = arith.cmpi eq, %27, %29 : vector<16x1xi32>
    %c1 = arith.constant 1 : index
    %c0_18 = arith.constant 0 : index
    %31 = vector.load %arg6[%c1, %c0_18] : memref<2x32xf32, #tpu.memory_space<vmem>>, vector<1x32xf32>
    %32 = vector.shape_cast %30 : vector<16x1xi1> to vector<16x1xi1>
    %33 = vector.broadcast %32 : vector<16x1xi1> to vector<16x32xi1>
    %34 = vector.shape_cast %31 : vector<1x32xf32> to vector<1x32xf32>
    %35 = vector.broadcast %34 : vector<1x32xf32> to vector<16x32xf32>
    %36 = vector.shape_cast %28 : vector<1x32xf32> to vector<1x32xf32>
    %37 = vector.broadcast %36 : vector<1x32xf32> to vector<16x32xf32>
    %38 = arith.select %33, %35, %37 : vector<16x32xi1>, vector<16x32xf32>
    %39 = arith.addf %26, %38 : vector<16x32xf32>
    %cst = arith.constant dense<0.000000e+00> : vector<16xf32>
    %40 = vector.multi_reduction <add>, %39, %cst [1] : vector<16x32xf32> to vector<16xf32>
    %41 = vector.shape_cast %40 : vector<16xf32> to vector<16x1xf32>
    %cst_19 = arith.constant 3.125000e-02 : f32
    %42 = vector.broadcast %cst_19 : f32 to vector<16x1xf32>
    %43 = arith.mulf %41, %42 : vector<16x1xf32>
    %44 = vector.broadcast %43 : vector<16x1xf32> to vector<16x32xf32>
    %45 = arith.subf %39, %44 : vector<16x32xf32>
    %46 = arith.mulf %45, %45 : vector<16x32xf32>
    %cst_20 = arith.constant dense<0.000000e+00> : vector<16xf32>
    %47 = vector.multi_reduction <add>, %46, %cst_20 [1] : vector<16x32xf32> to vector<16xf32>
    %48 = vector.shape_cast %47 : vector<16xf32> to vector<16x1xf32>
    %cst_21 = arith.constant 3.125000e-02 : f32
    %49 = vector.broadcast %cst_21 : f32 to vector<16x1xf32>
    %50 = arith.mulf %48, %49 : vector<16x1xf32>
    %cst_22 = arith.constant 9.99999996E-13 : f32
    %51 = vector.broadcast %cst_22 : f32 to vector<16x1xf32>
    %52 = arith.addf %50, %51 : vector<16x1xf32>
    %53 = math.rsqrt %52 : vector<16x1xf32>
    %54 = vector.broadcast %53 : vector<16x1xf32> to vector<16x32xf32>
    %55 = arith.mulf %45, %54 : vector<16x32xf32>
    %c0_23 = arith.constant 0 : index
    %c0_24 = arith.constant 0 : index
    %56 = vector.load %arg7[%c0_23, %c0_24] : memref<1x32xf32, #tpu.memory_space<vmem>>, vector<1x32xf32>
    %57 = vector.broadcast %56 : vector<1x32xf32> to vector<16x32xf32>
    %58 = arith.mulf %55, %57 : vector<16x32xf32>
    %c0_25 = arith.constant 0 : index
    %c0_26 = arith.constant 0 : index
    %59 = vector.load %arg8[%c0_25, %c0_26] : memref<1x32xf32, #tpu.memory_space<vmem>>, vector<1x32xf32>
    %60 = vector.broadcast %59 : vector<1x32xf32> to vector<16x32xf32>
    %61 = arith.addf %58, %60 : vector<16x32xf32>
    %c0_27 = arith.constant 0 : index
    %c0_28 = arith.constant 0 : index
    %62 = vector.load %arg9[%c0_27, %c0_28] : memref<16x32xf32, #tpu.memory_space<vmem>>, vector<16x32xf32>
    tpu.vector_store %arg9[%c0_27, %c0_28], %61 {strides = array<i32>} : memref<16x32xf32, #tpu.memory_space<vmem>>, vector<16x32xf32>,
    return
  }
  func.func @transform_1(%arg0: i32, %arg1: i32, %arg2: memref<64xi32, #tpu.memory_space<smem>>) -> (i32, i32) {
    %c2_i32 = arith.constant 2 : i32
    %0 = arith.muli %arg0, %c2_i32 : i32
    %1 = arith.addi %0, %arg1 : i32
    %c0_i32 = arith.constant 0 : i32
    %c0_i32_0 = arith.constant 0 : i32
    return %1, %c0_i32 : i32, i32
  }
  func.func @transform_2(%arg0: i32, %arg1: i32, %arg2: memref<64xi32, #tpu.memory_space<smem>>) -> (i32, i32) {
    %c2_i32 = arith.constant 2 : i32
    %0 = arith.muli %arg0, %c2_i32 : i32
    %1 = arith.addi %0, %arg1 : i32
    %c1_i32 = arith.constant 1 : i32
    %c0_i32 = arith.constant 0 : i32
    %2 = arith.cmpi eq, %c1_i32, %c0_i32 : i32
    %c1_i32_0 = arith.constant 1 : i32
    %3 = arith.select %2, %c1_i32_0, %c1_i32 : i32
    %4 = arith.remsi %1, %3 : i32
    %c0_i32_1 = arith.constant 0 : i32
    %5 = arith.cmpi ne, %4, %c0_i32_1 : i32
    %c0_i32_2 = arith.constant 0 : i32
    %6 = arith.cmpi slt, %4, %c0_i32_2 : i32
    %c0_i32_3 = arith.constant 0 : i32
    %7 = arith.cmpi slt, %3, %c0_i32_3 : i32
    %8 = arith.xori %6, %7 : i1
    %9 = arith.andi %8, %5 : i1
    %10 = arith.addi %4, %3 : i32
    %11 = arith.select %9, %10, %4 : i32
    %c0_i32_4 = arith.constant 0 : i32
    %c0_i32_5 = arith.constant 0 : i32
    return %11, %c0_i32_4 : i32, i32
  }
  func.func @transform_3(%arg0: i32, %arg1: i32, %arg2: memref<64xi32, #tpu.memory_space<smem>>) -> (i32, i32) {
    %c0_i32 = arith.constant 0 : i32
    %c0_i32_0 = arith.constant 0 : i32
    %c0_i32_1 = arith.constant 0 : i32
    return %c0_i32, %c0_i32_0 : i32, i32
  }
  func.func @transform_4(%arg0: i32, %arg1: i32, %arg2: memref<64xi32, #tpu.memory_space<smem>>) -> (i32, i32) {
    %c0_i32 = arith.constant 0 : i32
    %c0_i32_0 = arith.constant 0 : i32
    %c0_i32_1 = arith.constant 0 : i32
    return %c0_i32, %c0_i32_0 : i32, i32
  }
  func.func @transform_5(%arg0: i32, %arg1: i32, %arg2: memref<64xi32, #tpu.memory_space<smem>>) -> (i32, i32) {
    %c0_i32 = arith.constant 0 : i32
    %c0_i32_0 = arith.constant 0 : i32
    %c0_i32_1 = arith.constant 0 : i32
    return %c0_i32, %c0_i32_0 : i32, i32
  }
  func.func @transform_6(%arg0: i32, %arg1: i32, %arg2: memref<64xi32, #tpu.memory_space<smem>>) -> (i32, i32) {
    %c2_i32 = arith.constant 2 : i32
    %0 = arith.muli %arg0, %c2_i32 : i32
    %1 = arith.addi %0, %arg1 : i32
    %c0_i32 = arith.constant 0 : i32
    %c0_i32_0 = arith.constant 0 : i32
    return %1, %c0_i32 : i32, i32
  }
}

</mosaic_0001>

<llo_original>
// kernel: tpu_custom_call.1
$region0: #{tpu_custom_call.1}
  #allocation0 [shape = 'u32[]', space=smem, size = 0x4, offset = 0x4, fixed_abs, tag = 'smem constant byte address 0x4 - core index']
  #allocation1 [shape = 'u32[144,128]{1,0:T(1,128)}', space=vmem, size = 0x12000, scoped, tag = 'internal scratch']
  #allocation2 [shape = 'f32[32,32]{1,0:T(8,128)}', space=vmem, size = 0x4000, scoped, tag = 'scratch operand']
  #allocation3 [shape = 's32[2]{0}', space=sflag, size = 0x8, scoped, tag = 'scratch operand']
  #allocation4 [shape = 's32[1]{0}', space=sflag, size = 0x4, scoped, tag = 'scoped memory for tpu_custom_call.1']
  #allocation5 [shape = 'u8[512]{0}', space=smem, size = 0x200, scoped, tag = 'prefetched SMEM operand 0']
  #allocation6 [shape = 's32[]', space=sflag, size = 0x4, offset = 0, fixed_abs, tag = 'sflag constant byte address 0x0 - dummy sync flag']
  #allocation7 [shape = 's32[]', space=sflag, size = 0x4, offset = 0, fixed_abs, tag = 'sflag constant byte address 0x0 - dummy sync flag']
  #allocation8 [shape = 's32[]', space=sflag, size = 0x4, offset = 0, fixed_abs, tag = 'sflag constant byte address 0x0 - dummy sync flag']
  #allocation9 [shape = 's32[]', space=sflag, size = 0x4, offset = 0, fixed_abs, tag = 'sflag constant byte address 0x0 - dummy sync flag']
  #allocation10 [shape = 's32[]', space=sflag, size = 0x4, offset = 0, fixed_abs, tag = 'sflag constant byte address 0x0 - dummy sync flag']
  #allocation11 [shape = 's32[]', space=sflag, size = 0x4, offset = 0, fixed_abs, tag = 'sflag constant byte address 0x0 - dummy sync flag']
  #allocation12 [shape = 's32[]', space=sflag, size = 0x4, offset = 0, fixed_abs, tag = 'sflag constant byte address 0x0 - dummy sync flag']
  #allocation13 [shape = 's32[]', space=sflag, size = 0x4, offset = 0, fixed_abs, tag = 'sflag constant byte address 0x0 - dummy sync flag']
  #allocation14 [shape = 's32[]', space=sflag, size = 0x4, offset = 0, fixed_abs, tag = 'sflag constant byte address 0x0 - dummy sync flag']
  #allocation15 [shape = 's32[]', space=sflag, size = 0x4, offset = 0, fixed_abs, tag = 'sflag constant byte address 0x0 - dummy sync flag']
  #allocation16 [shape = 's32[]', space=sflag, size = 0x4, offset = 0, fixed_abs, tag = 'sflag constant byte address 0x0 - dummy sync flag']
  #allocation17 [shape = 's32[]', space=sflag, size = 0x4, offset = 0, fixed_abs, tag = 'sflag constant byte address 0x0 - dummy sync flag']
  #allocation18 [shape = 's32[]', space=sflag, size = 0x4, offset = 0, fixed_abs, tag = 'sflag constant byte address 0x0 - dummy sync flag']
  #allocation19 [shape = 's32[]', space=sflag, size = 0x4, offset = 0, fixed_abs, tag = 'sflag constant byte address 0x0 - dummy sync flag']
  #allocation20 [shape = 's32[]', space=sflag, size = 0x4, offset = 0, fixed_abs, tag = 'sflag constant byte address 0x0 - dummy sync flag']
  #allocation21 [shape = 's32[]', space=sflag, size = 0x4, offset = 0, fixed_abs, tag = 'sflag constant byte address 0x0 - dummy sync flag']
  %s0 = inlined_call_operand.vmem [shape: s32[64], index: 0, kind: input, shape index: {}]
  %s1 = inlined_call_operand.vmem [shape: f32[64,32], index: 1, kind: input, shape index: {}]
  %s2 = inlined_call_operand.vmem [shape: s32[64,1], index: 2, kind: input, shape index: {}]
  %s3 = inlined_call_operand.vmem [shape: f32[16,32], index: 3, kind: input, shape index: {}]
  %s4 = inlined_call_operand.vmem [shape: f32[2,32], index: 4, kind: input, shape index: {}]
  %s5 = inlined_call_operand.vmem [shape: f32[1,32], index: 5, kind: input, shape index: {}]
  %s6 = inlined_call_operand.vmem [shape: f32[1,32], index: 6, kind: input, shape index: {}]
  %s7 = inlined_call_operand.vmem [shape: f32[64,32], index: 7, kind: output, shape index: {}]
  %s8 = sld [smem:[#allocation0]]
  $region555: #{tpu_custom_call.1} parent=0
    _
  %s10 = ssub.s32 1, %s8
  %s11 = scalar_select 0, %s10, %s8
  %s12 = sshll.u32 %s0, 4
  %s13 = int_to_ptr.vmem [resolvable:$true] %s12
  %15 = dma.vmem_to_smem %s13, 16, [#allocation5], [#allocation4]
  %16 = dma.done [#allocation4], 16
  %17 = sfence
  loop: start=0, step=1, limit=6
  $region2: #{tpu_custom_call.1} parent=0 // loop_pre_header
    _
  $region3: #{tpu_custom_call.1} parent=0 // loop_header
    %s19 = sphi 0, %s23
    %p20 = scmp.ge.s32.totalorder %s19, 6
    %s26 = sphi 0, %s38
    %s27 = sphi 0, %s34
    %s28 = sphi 0, %s26
    %s29 = sphi 0, %s27
    %s30 = sphi 0, %s28
    %s31 = sphi 0, %s29
    %s45 = sphi 0, %s47
    %s48 = sphi 0, %s45
    %s49 = sphi 0, %s48
    %s65 = sphi 0, %s49
    %s69 = sphi 0, %s69
    %s71 = sphi 0, %s69
    %s72 = sphi 0, %s71
    %s86 = sphi 0, %s72
    %s90 = sphi 0, %s90
    %s92 = sphi 0, %s90
    %s93 = sphi 0, %s92
    %s107 = sphi 0, %s93
    %s111 = sphi 0, %s111
    %s113 = sphi 0, %s111
    %s114 = sphi 0, %s113
    %s128 = sphi 0, %s114
    %s132 = sphi 0, %s132
    %s134 = sphi 0, %s132
    %s135 = sphi 0, %s134
    %s149 = sphi 0, %s135
    %s159 = sphi 0, %s161
    %s162 = sphi 0, %s159
    %s163 = sphi 0, %s162
    %s179 = sphi 0, %s163
  $region4: #{tpu_custom_call.1} parent=0 // loop_header_branch
    %22 = sbr.rel (%p20) target = $region8
  $region5: #{tpu_custom_call.1} parent=0 // loop_body
    %s24 = ssub.s32 %s19, 1
    %s25 = ssub.s32 %s19, 2
    %s32 = sadd.s32 1, %s27
    %p33 = scmp.ge.s32.totalorder %s32, 2
    %s34 = scalar_select %p33, 0, %s32
    %s35 = sadd.s32 1, %s26
    %s36 = scalar_select %p33, %s35, %s26
    %p37 = scmp.ge.s32.totalorder %s36, 2
    %s38 = scalar_select %p37, 0, %s36
    %s39 = smul.u32 %s26, 2
    %s40 = sadd.s32 %s39, %s27
    %s41 = smul.u32 %s38, 2
    %s42 = sadd.s32 %s41, %s34
    %s43 = ssub.s32 %s40, %s42
    %p44 = scmp.eq.s32.totalorder %s43, 0
    %s46 = sadd.s32 %s45, 1
    %s47 = scalar_select %p44, %s45, %s46
    %p50 = pneg %p44
    %p51 = scmp.eq.s32.totalorder %s19, 3
    %p52 = por %p50, %p51
    %p53 = scmp.ne.s32.totalorder %s45, %s48
    %p54 = scmp.eq.s32.totalorder %s19, 0
    %p55 = por %p53, %p54
    %p56 = scmp.ne.s32.totalorder %s45, %s48
    %p57 = scmp.eq.s32.totalorder %s24, 3
    %p58 = por %p56, %p57
    %p59 = scmp.ne.s32.totalorder %s48, %s49
    %p60 = scmp.eq.s32.totalorder %s24, 0
    %p61 = por %p59, %p60
    %p62 = scmp.ne.s32.totalorder %s48, %s49
    %p63 = scmp.eq.s32.totalorder %s25, 3
    %p64 = por %p62, %p63
    %p66 = scmp.ne.s32.totalorder %s49, %s65
    %p67 = scmp.eq.s32.totalorder %s25, 0
    %p68 = por %p66, %p67
    %s70 = sadd.s32 %s69, 1
    %p73 = scmp.eq.s32.totalorder %s19, 3
    %p74 = scmp.ne.s32.totalorder %s69, %s71
    %p75 = scmp.eq.s32.totalorder %s19, 0
    %p76 = por %p74, %p75
    %p77 = scmp.ne.s32.totalorder %s69, %s71
    %p78 = scmp.eq.s32.totalorder %s24, 3
    %p79 = por %p77, %p78
    %p80 = scmp.ne.s32.totalorder %s71, %s72
    %p81 = scmp.eq.s32.totalorder %s24, 0
    %p82 = por %p80, %p81
    %p83 = scmp.ne.s32.totalorder %s71, %s72
    %p84 = scmp.eq.s32.totalorder %s25, 3
    %p85 = por %p83, %p84
    %p87 = scmp.ne.s32.totalorder %s72, %s86
    %p88 = scmp.eq.s32.totalorder %s25, 0
    %p89 = por %p87, %p88
    %s91 = sadd.s32 %s90, 1
    %p94 = scmp.eq.s32.totalorder %s19, 3
    %p95 = scmp.ne.s32.totalorder %s90, %s92
    %p96 = scmp.eq.s32.totalorder %s19, 0
    %p97 = por %p95, %p96
    %p98 = scmp.ne.s32.totalorder %s90, %s92
    %p99 = scmp.eq.s32.totalorder %s24, 3
    %p100 = por %p98, %p99
    %p101 = scmp.ne.s32.totalorder %s92, %s93
    %p102 = scmp.eq.s32.totalorder %s24, 0
    %p103 = por %p101, %p102
    %p104 = scmp.ne.s32.totalorder %s92, %s93
    %p105 = scmp.eq.s32.totalorder %s25, 3
    %p106 = por %p104, %p105
    %p108 = scmp.ne.s32.totalorder %s93, %s107
    %p109 = scmp.eq.s32.totalorder %s25, 0
    %p110 = por %p108, %p109
    %s112 = sadd.s32 %s111, 1
    %p115 = scmp.eq.s32.totalorder %s19, 3
    %p116 = scmp.ne.s32.totalorder %s111, %s113
    %p117 = scmp.eq.s32.totalorder %s19, 0
    %p118 = por %p116, %p117
    %p119 = scmp.ne.s32.totalorder %s111, %s113
    %p120 = scmp.eq.s32.totalorder %s24, 3
    %p121 = por %p119, %p120
    %p122 = scmp.ne.s32.totalorder %s113, %s114
    %p123 = scmp.eq.s32.totalorder %s24, 0
    %p124 = por %p122, %p123
    %p125 = scmp.ne.s32.totalorder %s113, %s114
    %p126 = scmp.eq.s32.totalorder %s25, 3
    %p127 = por %p125, %p126
    %p129 = scmp.ne.s32.totalorder %s114, %s128
    %p130 = scmp.eq.s32.totalorder %s25, 0
    %p131 = por %p129, %p130
    %s133 = sadd.s32 %s132, 1
    %p136 = scmp.eq.s32.totalorder %s19, 3
    %p137 = scmp.ne.s32.totalorder %s132, %s134
    %p138 = scmp.eq.s32.totalorder %s19, 0
    %p139 = por %p137, %p138
    %p140 = scmp.ne.s32.totalorder %s132, %s134
    %p141 = scmp.eq.s32.totalorder %s24, 3
    %p142 = por %p140, %p141
    %p143 = scmp.ne.s32.totalorder %s134, %s135
    %p144 = scmp.eq.s32.totalorder %s24, 0
    %p145 = por %p143, %p144
    %p146 = scmp.ne.s32.totalorder %s134, %s135
    %p147 = scmp.eq.s32.totalorder %s25, 3
    %p148 = por %p146, %p147
    %p150 = scmp.ne.s32.totalorder %s135, %s149
    %p151 = scmp.eq.s32.totalorder %s25, 0
    %p152 = por %p150, %p151
    %s153 = smul.u32 %s26, 2
    %s154 = sadd.s32 %s153, %s27
    %s155 = smul.u32 %s38, 2
    %s156 = sadd.s32 %s155, %s34
    %s157 = ssub.s32 %s154, %s156
    %p158 = scmp.eq.s32.totalorder %s157, 0
    %s160 = sadd.s32 %s159, 1
    %s161 = scalar_select %p158, %s159, %s160
    %p164 = pneg %p158
    %p165 = scmp.eq.s32.totalorder %s19, 3
    %p166 = por %p164, %p165
    %p167 = scmp.ne.s32.totalorder %s159, %s162
    %p168 = scmp.eq.s32.totalorder %s19, 0
    %p169 = por %p167, %p168
    %p170 = scmp.ne.s32.totalorder %s159, %s162
    %p171 = scmp.eq.s32.totalorder %s24, 3
    %p172 = por %p170, %p171
    %p173 = scmp.ne.s32.totalorder %s162, %s163
    %p174 = scmp.eq.s32.totalorder %s24, 0
    %p175 = por %p173, %p174
    %p176 = scmp.ne.s32.totalorder %s162, %s163
    %p177 = scmp.eq.s32.totalorder %s25, 3
    %p178 = por %p176, %p177
    %p180 = scmp.ne.s32.totalorder %s163, %s179
    %p181 = scmp.eq.s32.totalorder %s25, 0
    %p182 = por %p180, %p181
    %p183 = scmp.le.s32.totalorder 1, %s19
    %p184 = scmp.lt.s32.totalorder %s19, 5
    %p185 = pnand %p183, %p184
    %p186 = pneg %p185
    // Predicated region
    $region9: #{tpu_custom_call.1} parent=5 // pred_check
      _
    $region10: #{tpu_custom_call.1} parent=5 // pred_check_branch
      %188 = sbr.rel (%p185) target = $region12
    $region11: #{tpu_custom_call.1} parent=5 // pred_region
      %s189 = ssub.s32 %s19, 1
      // Predicated region
      $region13: #{tpu_custom_call.1} parent=11 // pred_check
        %p190 = pneg %p82
      $region14: #{tpu_custom_call.1} parent=11 // pred_check_branch
        %192 = sbr.rel (%p190) target = $region16
      $region15: #{tpu_custom_call.1} parent=11 // pred_region
        _
      $region16: #{tpu_custom_call.1} parent=11 // pred_fallthru
        _
      // Predicated region
      $region17: #{tpu_custom_call.1} parent=11 // pred_check
        %p193 = pneg %p103
      $region18: #{tpu_custom_call.1} parent=11 // pred_check_branch
        %195 = sbr.rel (%p193) target = $region20
      $region19: #{tpu_custom_call.1} parent=11 // pred_region
        _
      $region20: #{tpu_custom_call.1} parent=11 // pred_fallthru
        _
      // Predicated region
      $region21: #{tpu_custom_call.1} parent=11 // pred_check
        %p196 = pneg %p124
      $region22: #{tpu_custom_call.1} parent=11 // pred_check_branch
        %198 = sbr.rel (%p196) target = $region24
      $region23: #{tpu_custom_call.1} parent=11 // pred_region
        _
      $region24: #{tpu_custom_call.1} parent=11 // pred_fallthru
        _
      // Predicated region
      $region25: #{tpu_custom_call.1} parent=11 // pred_check
        %p199 = pneg %p145
      $region26: #{tpu_custom_call.1} parent=11 // pred_check_branch
        %201 = sbr.rel (%p199) target = $region28
      $region27: #{tpu_custom_call.1} parent=11 // pred_region
        _
      $region28: #{tpu_custom_call.1} parent=11 // pred_fallthru
        _
    $region12: #{tpu_custom_call.1} parent=5 // pred_fallthru
      _
    %p202 = scmp.lt.s32.totalorder %s19, 4
    // Predicated region
    $region29: #{tpu_custom_call.1} parent=5 // pred_check
      %p203 = pneg %p202
    $region30: #{tpu_custom_call.1} parent=5 // pred_check_branch
      %205 = sbr.rel (%p203) target = $region32
    $region31: #{tpu_custom_call.1} parent=5 // pred_region
      // Predicated region
      $region33: #{tpu_custom_call.1} parent=31 // pred_check
        %p206 = pneg %p55
      $region34: #{tpu_custom_call.1} parent=31 // pred_check_branch
        %208 = sbr.rel (%p206) target = $region36
      $region35: #{tpu_custom_call.1} parent=31 // pred_region
        %s209 = smul.u32 %s26, 2
        %s210 = sadd.s32 %s209, %s27
        %s211 = smul.u32 2, %s210
        %p212 = scmp.lt.s32.totalorder %s211, 7
        %s213 = scalar_select %p212, %s211, 7
        %s214 = smul.addr %s213, 8
        %s215 = scalar_lea.vmem %s2, %s214
        %s216 = smul.u32 %s26, 2
        %s217 = sadd.s32 %s216, %s27
        %s218 = smul.u32 2, %s217
      $region36: #{tpu_custom_call.1} parent=31 // pred_fallthru
        _
    $region32: #{tpu_custom_call.1} parent=5 // pred_fallthru
      _
    %p219 = scmp.le.s32.totalorder 1, %s19
    %p220 = scmp.lt.s32.totalorder %s19, 5
    %p221 = pnand %p219, %p220
    %p222 = pneg %p221
    // Predicated region
    $region37: #{tpu_custom_call.1} parent=5 // pred_check
      _
    $region38: #{tpu_custom_call.1} parent=5 // pred_check_branch
      %224 = sbr.rel (%p221) target = $region40
    $region39: #{tpu_custom_call.1} parent=5 // pred_region
      %s225 = ssub.s32 %s19, 1
      %s226 = smul.u32 %s28, 2
      %s227 = sadd.s32 %s226, %s29
      %s228 = smul.u32 2, %s227
      %p229 = scmp.lt.s32.totalorder %s228, 7
      %s230 = scalar_select %p229, %s228, 7
      %s231 = smul.addr %s230, 8
      %s232 = scalar_lea.vmem %s2, %s231
      %p233 = pneg %p61
      %p234 = pneg %p58
      %p235 = pneg %p82
      %p236 = pneg %p79
      %p237 = pneg %p103
      %p238 = pneg %p100
      %p239 = pneg %p124
      %p240 = pneg %p121
      %p241 = pneg %p145
      %p242 = pneg %p142
      %p243 = pneg %p175
      %p244 = pneg %p172
      %s245 = smul.u32 %s28, 2
      %s246 = sadd.s32 %s245, %s29
      %s247 = smul.u32 2, %s246
      %p248 = scmp.lt.s32.totalorder %s247, 7
      %s249 = scalar_select %p248, %s247, 7
      %s250 = smul.addr %s249, 8
      %s251 = scalar_lea.vmem %s7, %s250
      %s252 = smul.u32 %s28, 2
      %s253 = sadd.s32 %s252, %s29
      %s254 = smul.u32 2, %s253
      %p255 = scmp.lt.s32.totalorder %s254, 7
      %s256 = scalar_select %p255, %s254, 7
      %s257 = smul.addr %s256, 8
      %s258 = scalar_lea.vmem %s2, %s257
      %s259 = smul.u32 %s28, 2
      %s260 = sadd.s32 %s259, %s29
      %s261 = smul.u32 2, %s260
      %s262 = smul.u32 %s28, 2
      %s263 = sadd.s32 %s262, %s29
      %s264 = smul.u32 2, %s263
      %p265 = scmp.lt.s32.totalorder %s264, 7
      %s266 = scalar_select %p265, %s264, 7
      %s267 = smul.addr %s266, 8
      %s268 = scalar_lea.vmem %s7, %s267
      %s269 = smul.u32 %s28, 2
      %s270 = sadd.s32 %s269, %s29
      %s271 = smul.u32 2, %s270
      %p272 = scmp.eq.s32.totalorder %s29, 0
      // Predicated region
      $region41: #{tpu_custom_call.1} parent=39 // pred_check
        %p273 = pneg %p272
      $region42: #{tpu_custom_call.1} parent=39 // pred_check_branch
        %275 = sbr.rel (%p273) target = $region44
      $region43: #{tpu_custom_call.1} parent=39 // pred_region
        %s276 = smul.u32 %s28, 32
        loop: start=0, step=1, limit=2
        $region45: #{tpu_custom_call.1} parent=43 // loop_pre_header
          _
        $region46: #{tpu_custom_call.1} parent=43 // loop_header
          %s278 = sphi 0, %s282
          %p279 = scmp.ge.s32.totalorder %s278, 2
        $region47: #{tpu_custom_call.1} parent=43 // loop_header_branch
          %281 = sbr.rel (%p279) target = $region51
        $region48: #{tpu_custom_call.1} parent=43 // loop_body
          %s283 = smul.u32 %s278, 8
          %s284 = sadd.s32 %s276, %s283
          %s285 = sld [smem:[#allocation5 + %s284]]
          %s286 = scalar_lea.vmem %s1, %s285
          %s287 = scalar_lea.vmem [#allocation2], %s283
          %p289 = scmp.lt.u32.totalorder 1, 8
          %p290 = pneg %p289
          // Predicated region
          $region52: #{tpu_custom_call.1} parent=48 // pred_check
            _
          $region53: #{tpu_custom_call.1} parent=48 // pred_check_branch
            %292 = sbr.rel (%p289) target = $region55
          $region54: #{tpu_custom_call.1} parent=48 // pred_region
            %s307 = sand.u32 1, 7
            %p308 = scmp.eq.s32.totalorder %s307, 0
            %p309 = pneg %p308
            // Predicated region
            $region67: #{tpu_custom_call.1} parent=54 // pred_check
              _
            $region68: #{tpu_custom_call.1} parent=54 // pred_check_branch
              %311 = sbr.rel (%p308) target = $region70
            $region69: #{tpu_custom_call.1} parent=54 // pred_region
              %s312 = sand.u32 1, 7
              %s313 = ssub.s32 1, %s312
              %s314 = scalar_lea.vmem %s286, %s313
              %s315 = ssub.s32 1, %s312
              %s316 = scalar_lea.vmem %s287, %s315 [#allocation2]
              %s317 = sshllo.u32 0, %s312
              loop: start=0, step=1, limit=1
              $region71: #{tpu_custom_call.1} parent=69 // loop_pre_header
                _
              $region72: #{tpu_custom_call.1} parent=69 // loop_header
                %s319 = sphi 0, %s323
                %p320 = scmp.ge.s32.totalorder %s319, 1
                %s324 = sphi %s314, %s314
                %s325 = sphi %s316, %s316
              $region73: #{tpu_custom_call.1} parent=69 // loop_header_branch
                %322 = sbr.rel (%p320) target = $region77
              $region74: #{tpu_custom_call.1} parent=69 // loop_body
                %v326 = vld [vmem:[%s324] sm:%s317]
                %327 = vst [vmem:[%s325] sm:%s317] %v326
              $region75: #{tpu_custom_call.1} parent=69 // loop_footer
                %s323 = sadd.s32 1, %s319
              $region76: #{tpu_custom_call.1} parent=69 // loop_footer_branch
                %318 = sbr.rel target = $region72
              $region77: #{tpu_custom_call.1} parent=69 // loop_exit
                _
            $region70: #{tpu_custom_call.1} parent=54 // pred_fallthru
              _
          $region55: #{tpu_custom_call.1} parent=48 // pred_fallthru
            _
          // Predicated region
          $region56: #{tpu_custom_call.1} parent=48 // pred_check
            %p293 = pneg %p289
          $region57: #{tpu_custom_call.1} parent=48 // pred_check_branch
            %295 = sbr.rel (%p293) target = $region59
          $region58: #{tpu_custom_call.1} parent=48 // pred_region
            %s296 = sshllo.u32 0, 1
            loop: start=0, step=1, limit=1
            $region60: #{tpu_custom_call.1} parent=58 // loop_pre_header
              _
            $region61: #{tpu_custom_call.1} parent=58 // loop_header
              %s298 = sphi 0, %s302
              %p299 = scmp.ge.s32.totalorder %s298, 1
              %s303 = sphi %s286, %s286
              %s304 = sphi %s287, %s287
            $region62: #{tpu_custom_call.1} parent=58 // loop_header_branch
              %301 = sbr.rel (%p299) target = $region66
            $region63: #{tpu_custom_call.1} parent=58 // loop_body
              %v305 = vld [vmem:[%s303] sm:%s296]
              %306 = vst [vmem:[%s304] sm:%s296] %v305
            $region64: #{tpu_custom_call.1} parent=58 // loop_footer
              %s302 = sadd.s32 1, %s298
            $region65: #{tpu_custom_call.1} parent=58 // loop_footer_branch
              %297 = sbr.rel target = $region61
            $region66: #{tpu_custom_call.1} parent=58 // loop_exit
              _
          $region59: #{tpu_custom_call.1} parent=48 // pred_fallthru
            _
          // Predicated region
          $region78: #{tpu_custom_call.1} parent=48 // pred_check
            _
          $region79: #{tpu_custom_call.1} parent=48 // pred_check_branch
            %330 = sbr.rel (0) target = $region81
          $region80: #{tpu_custom_call.1} parent=48 // pred_region
            %331 = vsyncadd [#allocation3], 16
          $region81: #{tpu_custom_call.1} parent=48 // pred_fallthru
            _
          %s332 = sadd.s32 %s283, 1
          %s333 = sadd.s32 %s276, %s332
          %s334 = sld [smem:[#allocation5 + %s333]]
          %s335 = scalar_lea.vmem %s1, %s334
          %s336 = scalar_lea.vmem [#allocation2], %s332
          %p338 = scmp.lt.u32.totalorder 1, 8
          %p339 = pneg %p338
          // Predicated region
          $region82: #{tpu_custom_call.1} parent=48 // pred_check
            _
          $region83: #{tpu_custom_call.1} parent=48 // pred_check_branch
            %341 = sbr.rel (%p338) target = $region85
          $region84: #{tpu_custom_call.1} parent=48 // pred_region
            %s356 = sand.u32 1, 7
            %p357 = scmp.eq.s32.totalorder %s356, 0
            %p358 = pneg %p357
            // Predicated region
            $region97: #{tpu_custom_call.1} parent=84 // pred_check
              _
            $region98: #{tpu_custom_call.1} parent=84 // pred_check_branch
              %360 = sbr.rel (%p357) target = $region100
            $region99: #{tpu_custom_call.1} parent=84 // pred_region
              %s361 = sand.u32 1, 7
              %s362 = ssub.s32 1, %s361
              %s363 = scalar_lea.vmem %s335, %s362
              %s364 = ssub.s32 1, %s361
              %s365 = scalar_lea.vmem %s336, %s364 [#allocation2]
              %s366 = sshllo.u32 0, %s361
              loop: start=0, step=1, limit=1
              $region101: #{tpu_custom_call.1} parent=99 // loop_pre_header
                _
              $region102: #{tpu_custom_call.1} parent=99 // loop_header
                %s368 = sphi 0, %s372
                %p369 = scmp.ge.s32.totalorder %s368, 1
                %s373 = sphi %s363, %s363
                %s374 = sphi %s365, %s365
              $region103: #{tpu_custom_call.1} parent=99 // loop_header_branch
                %371 = sbr.rel (%p369) target = $region107
              $region104: #{tpu_custom_call.1} parent=99 // loop_body
                %v375 = vld [vmem:[%s373] sm:%s366]
                %376 = vst [vmem:[%s374] sm:%s366] %v375
              $region105: #{tpu_custom_call.1} parent=99 // loop_footer
                %s372 = sadd.s32 1, %s368
              $region106: #{tpu_custom_call.1} parent=99 // loop_footer_branch
                %367 = sbr.rel target = $region102
              $region107: #{tpu_custom_call.1} parent=99 // loop_exit
                _
            $region100: #{tpu_custom_call.1} parent=84 // pred_fallthru
              _
          $region85: #{tpu_custom_call.1} parent=48 // pred_fallthru
            _
          // Predicated region
          $region86: #{tpu_custom_call.1} parent=48 // pred_check
            %p342 = pneg %p338
          $region87: #{tpu_custom_call.1} parent=48 // pred_check_branch
            %344 = sbr.rel (%p342) target = $region89
          $region88: #{tpu_custom_call.1} parent=48 // pred_region
            %s345 = sshllo.u32 0, 1
            loop: start=0, step=1, limit=1
            $region90: #{tpu_custom_call.1} parent=88 // loop_pre_header
              _
            $region91: #{tpu_custom_call.1} parent=88 // loop_header
              %s347 = sphi 0, %s351
              %p348 = scmp.ge.s32.totalorder %s347, 1
              %s352 = sphi %s335, %s335
              %s353 = sphi %s336, %s336
            $region92: #{tpu_custom_call.1} parent=88 // loop_header_branch
              %350 = sbr.rel (%p348) target = $region96
            $region93: #{tpu_custom_call.1} parent=88 // loop_body
              %v354 = vld [vmem:[%s352] sm:%s345]
              %355 = vst [vmem:[%s353] sm:%s345] %v354
            $region94: #{tpu_custom_call.1} parent=88 // loop_footer
              %s351 = sadd.s32 1, %s347
            $region95: #{tpu_custom_call.1} parent=88 // loop_footer_branch
              %346 = sbr.rel target = $region91
            $region96: #{tpu_custom_call.1} parent=88 // loop_exit
              _
          $region89: #{tpu_custom_call.1} parent=48 // pred_fallthru
            _
          // Predicated region
          $region108: #{tpu_custom_call.1} parent=48 // pred_check
            _
          $region109: #{tpu_custom_call.1} parent=48 // pred_check_branch
            %379 = sbr.rel (0) target = $region111
          $region110: #{tpu_custom_call.1} parent=48 // pred_region
            %380 = vsyncadd [#allocation3], 16
          $region111: #{tpu_custom_call.1} parent=48 // pred_fallthru
            _
          %s381 = sadd.s32 %s283, 2
          %s382 = sadd.s32 %s276, %s381
          %s383 = sld [smem:[#allocation5 + %s382]]
          %s384 = scalar_lea.vmem %s1, %s383
          %s385 = scalar_lea.vmem [#allocation2], %s381
          %p387 = scmp.lt.u32.totalorder 1, 8
          %p388 = pneg %p387
          // Predicated region
          $region112: #{tpu_custom_call.1} parent=48 // pred_check
            _
          $region113: #{tpu_custom_call.1} parent=48 // pred_check_branch
            %390 = sbr.rel (%p387) target = $region115
          $region114: #{tpu_custom_call.1} parent=48 // pred_region
            %s405 = sand.u32 1, 7
            %p406 = scmp.eq.s32.totalorder %s405, 0
            %p407 = pneg %p406
            // Predicated region
            $region127: #{tpu_custom_call.1} parent=114 // pred_check
              _
            $region128: #{tpu_custom_call.1} parent=114 // pred_check_branch
              %409 = sbr.rel (%p406) target = $region130
            $region129: #{tpu_custom_call.1} parent=114 // pred_region
              %s410 = sand.u32 1, 7
              %s411 = ssub.s32 1, %s410
              %s412 = scalar_lea.vmem %s384, %s411
              %s413 = ssub.s32 1, %s410
              %s414 = scalar_lea.vmem %s385, %s413 [#allocation2]
              %s415 = sshllo.u32 0, %s410
              loop: start=0, step=1, limit=1
              $region131: #{tpu_custom_call.1} parent=129 // loop_pre_header
                _
              $region132: #{tpu_custom_call.1} parent=129 // loop_header
                %s417 = sphi 0, %s421
                %p418 = scmp.ge.s32.totalorder %s417, 1
                %s422 = sphi %s412, %s412
                %s423 = sphi %s414, %s414
              $region133: #{tpu_custom_call.1} parent=129 // loop_header_branch
                %420 = sbr.rel (%p418) target = $region137
              $region134: #{tpu_custom_call.1} parent=129 // loop_body
                %v424 = vld [vmem:[%s422] sm:%s415]
                %425 = vst [vmem:[%s423] sm:%s415] %v424
              $region135: #{tpu_custom_call.1} parent=129 // loop_footer
                %s421 = sadd.s32 1, %s417
              $region136: #{tpu_custom_call.1} parent=129 // loop_footer_branch
                %416 = sbr.rel target = $region132
              $region137: #{tpu_custom_call.1} parent=129 // loop_exit
                _
            $region130: #{tpu_custom_call.1} parent=114 // pred_fallthru
              _
          $region115: #{tpu_custom_call.1} parent=48 // pred_fallthru
            _
          // Predicated region
          $region116: #{tpu_custom_call.1} parent=48 // pred_check
            %p391 = pneg %p387
          $region117: #{tpu_custom_call.1} parent=48 // pred_check_branch
            %393 = sbr.rel (%p391) target = $region119
          $region118: #{tpu_custom_call.1} parent=48 // pred_region
            %s394 = sshllo.u32 0, 1
            loop: start=0, step=1, limit=1
            $region120: #{tpu_custom_call.1} parent=118 // loop_pre_header
              _
            $region121: #{tpu_custom_call.1} parent=118 // loop_header
              %s396 = sphi 0, %s400
              %p397 = scmp.ge.s32.totalorder %s396, 1
              %s401 = sphi %s384, %s384
              %s402 = sphi %s385, %s385
            $region122: #{tpu_custom_call.1} parent=118 // loop_header_branch
              %399 = sbr.rel (%p397) target = $region126
            $region123: #{tpu_custom_call.1} parent=118 // loop_body
              %v403 = vld [vmem:[%s401] sm:%s394]
              %404 = vst [vmem:[%s402] sm:%s394] %v403
            $region124: #{tpu_custom_call.1} parent=118 // loop_footer
              %s400 = sadd.s32 1, %s396
            $region125: #{tpu_custom_call.1} parent=118 // loop_footer_branch
              %395 = sbr.rel target = $region121
            $region126: #{tpu_custom_call.1} parent=118 // loop_exit
              _
          $region119: #{tpu_custom_call.1} parent=48 // pred_fallthru
            _
          // Predicated region
          $region138: #{tpu_custom_call.1} parent=48 // pred_check
            _
          $region139: #{tpu_custom_call.1} parent=48 // pred_check_branch
            %428 = sbr.rel (0) target = $region141
          $region140: #{tpu_custom_call.1} parent=48 // pred_region
            %429 = vsyncadd [#allocation3], 16
          $region141: #{tpu_custom_call.1} parent=48 // pred_fallthru
            _
          %s430 = sadd.s32 %s283, 3
          %s431 = sadd.s32 %s276, %s430
          %s432 = sld [smem:[#allocation5 + %s431]]
          %s433 = scalar_lea.vmem %s1, %s432
          %s434 = scalar_lea.vmem [#allocation2], %s430
          %p436 = scmp.lt.u32.totalorder 1, 8
          %p437 = pneg %p436
          // Predicated region
          $region142: #{tpu_custom_call.1} parent=48 // pred_check
            _
          $region143: #{tpu_custom_call.1} parent=48 // pred_check_branch
            %439 = sbr.rel (%p436) target = $region145
          $region144: #{tpu_custom_call.1} parent=48 // pred_region
            %s454 = sand.u32 1, 7
            %p455 = scmp.eq.s32.totalorder %s454, 0
            %p456 = pneg %p455
            // Predicated region
            $region157: #{tpu_custom_call.1} parent=144 // pred_check
              _
            $region158: #{tpu_custom_call.1} parent=144 // pred_check_branch
              %458 = sbr.rel (%p455) target = $region160
            $region159: #{tpu_custom_call.1} parent=144 // pred_region
              %s459 = sand.u32 1, 7
              %s460 = ssub.s32 1, %s459
              %s461 = scalar_lea.vmem %s433, %s460
              %s462 = ssub.s32 1, %s459
              %s463 = scalar_lea.vmem %s434, %s462 [#allocation2]
              %s464 = sshllo.u32 0, %s459
              loop: start=0, step=1, limit=1
              $region161: #{tpu_custom_call.1} parent=159 // loop_pre_header
                _
              $region162: #{tpu_custom_call.1} parent=159 // loop_header
                %s466 = sphi 0, %s470
                %p467 = scmp.ge.s32.totalorder %s466, 1
                %s471 = sphi %s461, %s461
                %s472 = sphi %s463, %s463
              $region163: #{tpu_custom_call.1} parent=159 // loop_header_branch
                %469 = sbr.rel (%p467) target = $region167
              $region164: #{tpu_custom_call.1} parent=159 // loop_body
                %v473 = vld [vmem:[%s471] sm:%s464]
                %474 = vst [vmem:[%s472] sm:%s464] %v473
              $region165: #{tpu_custom_call.1} parent=159 // loop_footer
                %s470 = sadd.s32 1, %s466
              $region166: #{tpu_custom_call.1} parent=159 // loop_footer_branch
                %465 = sbr.rel target = $region162
              $region167: #{tpu_custom_call.1} parent=159 // loop_exit
                _
            $region160: #{tpu_custom_call.1} parent=144 // pred_fallthru
              _
          $region145: #{tpu_custom_call.1} parent=48 // pred_fallthru
            _
          // Predicated region
          $region146: #{tpu_custom_call.1} parent=48 // pred_check
            %p440 = pneg %p436
          $region147: #{tpu_custom_call.1} parent=48 // pred_check_branch
            %442 = sbr.rel (%p440) target = $region149
          $region148: #{tpu_custom_call.1} parent=48 // pred_region
            %s443 = sshllo.u32 0, 1
            loop: start=0, step=1, limit=1
            $region150: #{tpu_custom_call.1} parent=148 // loop_pre_header
              _
            $region151: #{tpu_custom_call.1} parent=148 // loop_header
              %s445 = sphi 0, %s449
              %p446 = scmp.ge.s32.totalorder %s445, 1
              %s450 = sphi %s433, %s433
              %s451 = sphi %s434, %s434
            $region152: #{tpu_custom_call.1} parent=148 // loop_header_branch
              %448 = sbr.rel (%p446) target = $region156
            $region153: #{tpu_custom_call.1} parent=148 // loop_body
              %v452 = vld [vmem:[%s450] sm:%s443]
              %453 = vst [vmem:[%s451] sm:%s443] %v452
            $region154: #{tpu_custom_call.1} parent=148 // loop_footer
              %s449 = sadd.s32 1, %s445
            $region155: #{tpu_custom_call.1} parent=148 // loop_footer_branch
              %444 = sbr.rel target = $region151
            $region156: #{tpu_custom_call.1} parent=148 // loop_exit
              _
          $region149: #{tpu_custom_call.1} parent=48 // pred_fallthru
            _
          // Predicated region
          $region168: #{tpu_custom_call.1} parent=48 // pred_check
            _
          $region169: #{tpu_custom_call.1} parent=48 // pred_check_branch
            %477 = sbr.rel (0) target = $region171
          $region170: #{tpu_custom_call.1} parent=48 // pred_region
            %478 = vsyncadd [#allocation3], 16
          $region171: #{tpu_custom_call.1} parent=48 // pred_fallthru
            _
          %s479 = sadd.s32 %s283, 4
          %s480 = sadd.s32 %s276, %s479
          %s481 = sld [smem:[#allocation5 + %s480]]
          %s482 = scalar_lea.vmem %s1, %s481
          %s483 = scalar_lea.vmem [#allocation2], %s479
          %p485 = scmp.lt.u32.totalorder 1, 8
          %p486 = pneg %p485
          // Predicated region
          $region172: #{tpu_custom_call.1} parent=48 // pred_check
            _
          $region173: #{tpu_custom_call.1} parent=48 // pred_check_branch
            %488 = sbr.rel (%p485) target = $region175
          $region174: #{tpu_custom_call.1} parent=48 // pred_region
            %s503 = sand.u32 1, 7
            %p504 = scmp.eq.s32.totalorder %s503, 0
            %p505 = pneg %p504
            // Predicated region
            $region187: #{tpu_custom_call.1} parent=174 // pred_check
              _
            $region188: #{tpu_custom_call.1} parent=174 // pred_check_branch
              %507 = sbr.rel (%p504) target = $region190
            $region189: #{tpu_custom_call.1} parent=174 // pred_region
              %s508 = sand.u32 1, 7
              %s509 = ssub.s32 1, %s508
              %s510 = scalar_lea.vmem %s482, %s509
              %s511 = ssub.s32 1, %s508
              %s512 = scalar_lea.vmem %s483, %s511 [#allocation2]
              %s513 = sshllo.u32 0, %s508
              loop: start=0, step=1, limit=1
              $region191: #{tpu_custom_call.1} parent=189 // loop_pre_header
                _
              $region192: #{tpu_custom_call.1} parent=189 // loop_header
                %s515 = sphi 0, %s519
                %p516 = scmp.ge.s32.totalorder %s515, 1
                %s520 = sphi %s510, %s510
                %s521 = sphi %s512, %s512
              $region193: #{tpu_custom_call.1} parent=189 // loop_header_branch
                %518 = sbr.rel (%p516) target = $region197
              $region194: #{tpu_custom_call.1} parent=189 // loop_body
                %v522 = vld [vmem:[%s520] sm:%s513]
                %523 = vst [vmem:[%s521] sm:%s513] %v522
              $region195: #{tpu_custom_call.1} parent=189 // loop_footer
                %s519 = sadd.s32 1, %s515
              $region196: #{tpu_custom_call.1} parent=189 // loop_footer_branch
                %514 = sbr.rel target = $region192
              $region197: #{tpu_custom_call.1} parent=189 // loop_exit
                _
            $region190: #{tpu_custom_call.1} parent=174 // pred_fallthru
              _
          $region175: #{tpu_custom_call.1} parent=48 // pred_fallthru
            _
          // Predicated region
          $region176: #{tpu_custom_call.1} parent=48 // pred_check
            %p489 = pneg %p485
          $region177: #{tpu_custom_call.1} parent=48 // pred_check_branch
            %491 = sbr.rel (%p489) target = $region179
          $region178: #{tpu_custom_call.1} parent=48 // pred_region
            %s492 = sshllo.u32 0, 1
            loop: start=0, step=1, limit=1
            $region180: #{tpu_custom_call.1} parent=178 // loop_pre_header
              _
            $region181: #{tpu_custom_call.1} parent=178 // loop_header
              %s494 = sphi 0, %s498
              %p495 = scmp.ge.s32.totalorder %s494, 1
              %s499 = sphi %s482, %s482
              %s500 = sphi %s483, %s483
            $region182: #{tpu_custom_call.1} parent=178 // loop_header_branch
              %497 = sbr.rel (%p495) target = $region186
            $region183: #{tpu_custom_call.1} parent=178 // loop_body
              %v501 = vld [vmem:[%s499] sm:%s492]
              %502 = vst [vmem:[%s500] sm:%s492] %v501
            $region184: #{tpu_custom_call.1} parent=178 // loop_footer
              %s498 = sadd.s32 1, %s494
            $region185: #{tpu_custom_call.1} parent=178 // loop_footer_branch
              %493 = sbr.rel target = $region181
            $region186: #{tpu_custom_call.1} parent=178 // loop_exit
              _
          $region179: #{tpu_custom_call.1} parent=48 // pred_fallthru
            _
          // Predicated region
          $region198: #{tpu_custom_call.1} parent=48 // pred_check
            _
          $region199: #{tpu_custom_call.1} parent=48 // pred_check_branch
            %526 = sbr.rel (0) target = $region201
          $region200: #{tpu_custom_call.1} parent=48 // pred_region
            %527 = vsyncadd [#allocation3], 16
          $region201: #{tpu_custom_call.1} parent=48 // pred_fallthru
            _
          %s528 = sadd.s32 %s283, 5
          %s529 = sadd.s32 %s276, %s528
          %s530 = sld [smem:[#allocation5 + %s529]]
          %s531 = scalar_lea.vmem %s1, %s530
          %s532 = scalar_lea.vmem [#allocation2], %s528
          %p534 = scmp.lt.u32.totalorder 1, 8
          %p535 = pneg %p534
          // Predicated region
          $region202: #{tpu_custom_call.1} parent=48 // pred_check
            _
          $region203: #{tpu_custom_call.1} parent=48 // pred_check_branch
            %537 = sbr.rel (%p534) target = $region205
          $region204: #{tpu_custom_call.1} parent=48 // pred_region
            %s552 = sand.u32 1, 7
            %p553 = scmp.eq.s32.totalorder %s552, 0
            %p554 = pneg %p553
            // Predicated region
            $region217: #{tpu_custom_call.1} parent=204 // pred_check
              _
            $region218: #{tpu_custom_call.1} parent=204 // pred_check_branch
              %556 = sbr.rel (%p553) target = $region220
            $region219: #{tpu_custom_call.1} parent=204 // pred_region
              %s557 = sand.u32 1, 7
              %s558 = ssub.s32 1, %s557
              %s559 = scalar_lea.vmem %s531, %s558
              %s560 = ssub.s32 1, %s557
              %s561 = scalar_lea.vmem %s532, %s560 [#allocation2]
              %s562 = sshllo.u32 0, %s557
              loop: start=0, step=1, limit=1
              $region221: #{tpu_custom_call.1} parent=219 // loop_pre_header
                _
              $region222: #{tpu_custom_call.1} parent=219 // loop_header
                %s564 = sphi 0, %s568
                %p565 = scmp.ge.s32.totalorder %s564, 1
                %s569 = sphi %s559, %s559
                %s570 = sphi %s561, %s561
              $region223: #{tpu_custom_call.1} parent=219 // loop_header_branch
                %567 = sbr.rel (%p565) target = $region227
              $region224: #{tpu_custom_call.1} parent=219 // loop_body
                %v571 = vld [vmem:[%s569] sm:%s562]
                %572 = vst [vmem:[%s570] sm:%s562] %v571
              $region225: #{tpu_custom_call.1} parent=219 // loop_footer
                %s568 = sadd.s32 1, %s564
              $region226: #{tpu_custom_call.1} parent=219 // loop_footer_branch
                %563 = sbr.rel target = $region222
              $region227: #{tpu_custom_call.1} parent=219 // loop_exit
                _
            $region220: #{tpu_custom_call.1} parent=204 // pred_fallthru
              _
          $region205: #{tpu_custom_call.1} parent=48 // pred_fallthru
            _
          // Predicated region
          $region206: #{tpu_custom_call.1} parent=48 // pred_check
            %p538 = pneg %p534
          $region207: #{tpu_custom_call.1} parent=48 // pred_check_branch
            %540 = sbr.rel (%p538) target = $region209
          $region208: #{tpu_custom_call.1} parent=48 // pred_region
            %s541 = sshllo.u32 0, 1
            loop: start=0, step=1, limit=1
            $region210: #{tpu_custom_call.1} parent=208 // loop_pre_header
              _
            $region211: #{tpu_custom_call.1} parent=208 // loop_header
              %s543 = sphi 0, %s547
              %p544 = scmp.ge.s32.totalorder %s543, 1
              %s548 = sphi %s531, %s531
              %s549 = sphi %s532, %s532
            $region212: #{tpu_custom_call.1} parent=208 // loop_header_branch
              %546 = sbr.rel (%p544) target = $region216
            $region213: #{tpu_custom_call.1} parent=208 // loop_body
              %v550 = vld [vmem:[%s548] sm:%s541]
              %551 = vst [vmem:[%s549] sm:%s541] %v550
            $region214: #{tpu_custom_call.1} parent=208 // loop_footer
              %s547 = sadd.s32 1, %s543
            $region215: #{tpu_custom_call.1} parent=208 // loop_footer_branch
              %542 = sbr.rel target = $region211
            $region216: #{tpu_custom_call.1} parent=208 // loop_exit
              _
          $region209: #{tpu_custom_call.1} parent=48 // pred_fallthru
            _
          // Predicated region
          $region228: #{tpu_custom_call.1} parent=48 // pred_check
            _
          $region229: #{tpu_custom_call.1} parent=48 // pred_check_branch
            %575 = sbr.rel (0) target = $region231
          $region230: #{tpu_custom_call.1} parent=48 // pred_region
            %576 = vsyncadd [#allocation3], 16
          $region231: #{tpu_custom_call.1} parent=48 // pred_fallthru
            _
          %s577 = sadd.s32 %s283, 6
          %s578 = sadd.s32 %s276, %s577
          %s579 = sld [smem:[#allocation5 + %s578]]
          %s580 = scalar_lea.vmem %s1, %s579
          %s581 = scalar_lea.vmem [#allocation2], %s577
          %p583 = scmp.lt.u32.totalorder 1, 8
          %p584 = pneg %p583
          // Predicated region
          $region232: #{tpu_custom_call.1} parent=48 // pred_check
            _
          $region233: #{tpu_custom_call.1} parent=48 // pred_check_branch
            %586 = sbr.rel (%p583) target = $region235
          $region234: #{tpu_custom_call.1} parent=48 // pred_region
            %s601 = sand.u32 1, 7
            %p602 = scmp.eq.s32.totalorder %s601, 0
            %p603 = pneg %p602
            // Predicated region
            $region247: #{tpu_custom_call.1} parent=234 // pred_check
              _
            $region248: #{tpu_custom_call.1} parent=234 // pred_check_branch
              %605 = sbr.rel (%p602) target = $region250
            $region249: #{tpu_custom_call.1} parent=234 // pred_region
              %s606 = sand.u32 1, 7
              %s607 = ssub.s32 1, %s606
              %s608 = scalar_lea.vmem %s580, %s607
              %s609 = ssub.s32 1, %s606
              %s610 = scalar_lea.vmem %s581, %s609 [#allocation2]
              %s611 = sshllo.u32 0, %s606
              loop: start=0, step=1, limit=1
              $region251: #{tpu_custom_call.1} parent=249 // loop_pre_header
                _
              $region252: #{tpu_custom_call.1} parent=249 // loop_header
                %s613 = sphi 0, %s617
                %p614 = scmp.ge.s32.totalorder %s613, 1
                %s618 = sphi %s608, %s608
                %s619 = sphi %s610, %s610
              $region253: #{tpu_custom_call.1} parent=249 // loop_header_branch
                %616 = sbr.rel (%p614) target = $region257
              $region254: #{tpu_custom_call.1} parent=249 // loop_body
                %v620 = vld [vmem:[%s618] sm:%s611]
                %621 = vst [vmem:[%s619] sm:%s611] %v620
              $region255: #{tpu_custom_call.1} parent=249 // loop_footer
                %s617 = sadd.s32 1, %s613
              $region256: #{tpu_custom_call.1} parent=249 // loop_footer_branch
                %612 = sbr.rel target = $region252
              $region257: #{tpu_custom_call.1} parent=249 // loop_exit
                _
            $region250: #{tpu_custom_call.1} parent=234 // pred_fallthru
              _
          $region235: #{tpu_custom_call.1} parent=48 // pred_fallthru
            _
          // Predicated region
          $region236: #{tpu_custom_call.1} parent=48 // pred_check
            %p587 = pneg %p583
          $region237: #{tpu_custom_call.1} parent=48 // pred_check_branch
            %589 = sbr.rel (%p587) target = $region239
          $region238: #{tpu_custom_call.1} parent=48 // pred_region
            %s590 = sshllo.u32 0, 1
            loop: start=0, step=1, limit=1
            $region240: #{tpu_custom_call.1} parent=238 // loop_pre_header
              _
            $region241: #{tpu_custom_call.1} parent=238 // loop_header
              %s592 = sphi 0, %s596
              %p593 = scmp.ge.s32.totalorder %s592, 1
              %s597 = sphi %s580, %s580
              %s598 = sphi %s581, %s581
            $region242: #{tpu_custom_call.1} parent=238 // loop_header_branch
              %595 = sbr.rel (%p593) target = $region246
            $region243: #{tpu_custom_call.1} parent=238 // loop_body
              %v599 = vld [vmem:[%s597] sm:%s590]
              %600 = vst [vmem:[%s598] sm:%s590] %v599
            $region244: #{tpu_custom_call.1} parent=238 // loop_footer
              %s596 = sadd.s32 1, %s592
            $region245: #{tpu_custom_call.1} parent=238 // loop_footer_branch
              %591 = sbr.rel target = $region241
            $region246: #{tpu_custom_call.1} parent=238 // loop_exit
              _
          $region239: #{tpu_custom_call.1} parent=48 // pred_fallthru
            _
          // Predicated region
          $region258: #{tpu_custom_call.1} parent=48 // pred_check
            _
          $region259: #{tpu_custom_call.1} parent=48 // pred_check_branch
            %624 = sbr.rel (0) target = $region261
          $region260: #{tpu_custom_call.1} parent=48 // pred_region
            %625 = vsyncadd [#allocation3], 16
          $region261: #{tpu_custom_call.1} parent=48 // pred_fallthru
            _
          %s626 = sadd.s32 %s283, 7
          %s627 = sadd.s32 %s276, %s626
          %s628 = sld [smem:[#allocation5 + %s627]]
          %s629 = scalar_lea.vmem %s1, %s628
          %s630 = scalar_lea.vmem [#allocation2], %s626
          %p632 = scmp.lt.u32.totalorder 1, 8
          %p633 = pneg %p632
          // Predicated region
          $region262: #{tpu_custom_call.1} parent=48 // pred_check
            _
          $region263: #{tpu_custom_call.1} parent=48 // pred_check_branch
            %635 = sbr.rel (%p632) target = $region265
          $region264: #{tpu_custom_call.1} parent=48 // pred_region
            %s650 = sand.u32 1, 7
            %p651 = scmp.eq.s32.totalorder %s650, 0
            %p652 = pneg %p651
            // Predicated region
            $region277: #{tpu_custom_call.1} parent=264 // pred_check
              _
            $region278: #{tpu_custom_call.1} parent=264 // pred_check_branch
              %654 = sbr.rel (%p651) target = $region280
            $region279: #{tpu_custom_call.1} parent=264 // pred_region
              %s655 = sand.u32 1, 7
              %s656 = ssub.s32 1, %s655
              %s657 = scalar_lea.vmem %s629, %s656
              %s658 = ssub.s32 1, %s655
              %s659 = scalar_lea.vmem %s630, %s658 [#allocation2]
              %s660 = sshllo.u32 0, %s655
              loop: start=0, step=1, limit=1
              $region281: #{tpu_custom_call.1} parent=279 // loop_pre_header
                _
              $region282: #{tpu_custom_call.1} parent=279 // loop_header
                %s662 = sphi 0, %s666
                %p663 = scmp.ge.s32.totalorder %s662, 1
                %s667 = sphi %s657, %s657
                %s668 = sphi %s659, %s659
              $region283: #{tpu_custom_call.1} parent=279 // loop_header_branch
                %665 = sbr.rel (%p663) target = $region287
              $region284: #{tpu_custom_call.1} parent=279 // loop_body
                %v669 = vld [vmem:[%s667] sm:%s660]
                %670 = vst [vmem:[%s668] sm:%s660] %v669
              $region285: #{tpu_custom_call.1} parent=279 // loop_footer
                %s666 = sadd.s32 1, %s662
              $region286: #{tpu_custom_call.1} parent=279 // loop_footer_branch
                %661 = sbr.rel target = $region282
              $region287: #{tpu_custom_call.1} parent=279 // loop_exit
                _
            $region280: #{tpu_custom_call.1} parent=264 // pred_fallthru
              _
          $region265: #{tpu_custom_call.1} parent=48 // pred_fallthru
            _
          // Predicated region
          $region266: #{tpu_custom_call.1} parent=48 // pred_check
            %p636 = pneg %p632
          $region267: #{tpu_custom_call.1} parent=48 // pred_check_branch
            %638 = sbr.rel (%p636) target = $region269
          $region268: #{tpu_custom_call.1} parent=48 // pred_region
            %s639 = sshllo.u32 0, 1
            loop: start=0, step=1, limit=1
            $region270: #{tpu_custom_call.1} parent=268 // loop_pre_header
              _
            $region271: #{tpu_custom_call.1} parent=268 // loop_header
              %s641 = sphi 0, %s645
              %p642 = scmp.ge.s32.totalorder %s641, 1
              %s646 = sphi %s629, %s629
              %s647 = sphi %s630, %s630
            $region272: #{tpu_custom_call.1} parent=268 // loop_header_branch
              %644 = sbr.rel (%p642) target = $region276
            $region273: #{tpu_custom_call.1} parent=268 // loop_body
              %v648 = vld [vmem:[%s646] sm:%s639]
              %649 = vst [vmem:[%s647] sm:%s639] %v648
            $region274: #{tpu_custom_call.1} parent=268 // loop_footer
              %s645 = sadd.s32 1, %s641
            $region275: #{tpu_custom_call.1} parent=268 // loop_footer_branch
              %640 = sbr.rel target = $region271
            $region276: #{tpu_custom_call.1} parent=268 // loop_exit
              _
          $region269: #{tpu_custom_call.1} parent=48 // pred_fallthru
            _
          // Predicated region
          $region288: #{tpu_custom_call.1} parent=48 // pred_check
            _
          $region289: #{tpu_custom_call.1} parent=48 // pred_check_branch
            %673 = sbr.rel (0) target = $region291
          $region290: #{tpu_custom_call.1} parent=48 // pred_region
            %674 = vsyncadd [#allocation3], 16
          $region291: #{tpu_custom_call.1} parent=48 // pred_fallthru
            _
        $region49: #{tpu_custom_call.1} parent=43 // loop_footer
          %s282 = sadd.s32 1, %s278
        $region50: #{tpu_custom_call.1} parent=43 // loop_footer_branch
          %277 = sbr.rel target = $region46
        $region51: #{tpu_custom_call.1} parent=43 // loop_exit
          _
      $region44: #{tpu_custom_call.1} parent=39 // pred_fallthru
        _
      %s675 = sadd.s32 %s29, 1
      %p676 = scmp.lt.s32.totalorder %s675, 2
      // Predicated region
      $region292: #{tpu_custom_call.1} parent=39 // pred_check
        %p677 = pneg %p676
      $region293: #{tpu_custom_call.1} parent=39 // pred_check_branch
        %679 = sbr.rel (%p677) target = $region295
      $region294: #{tpu_custom_call.1} parent=39 // pred_region
        %s680 = smul.u32 %s28, 2
        %s681 = sadd.s32 %s680, %s29
        %s682 = sadd.s32 %s681, 1
        %p683 = scmp.lt.s32.totalorder %s675, 0
        %s684 = ssub.s32 0, %s675
        %s685 = scalar_select %p683, %s684, %s675
        %s686 = sand.u32 %s685, 1
        %s687 = ssub.s32 0, %s686
        %s688 = scalar_select %p683, %s687, %s686
        %p689 = scmp.ne.s32.totalorder %s688, 0
        %p690 = scmp.lt.s32.totalorder %s688, 0
        %p691 = pnand %p690, %p689
        %p692 = pneg %p691
        %s693 = sadd.s32 %s688, 2
        %s694 = scalar_select %p692, %s693, %s688
        %s695 = smul.u32 %s682, 16
        %s696 = smul.u32 %s694, 16
        loop: start=0, step=1, limit=2
        $region296: #{tpu_custom_call.1} parent=294 // loop_pre_header
          _
        $region297: #{tpu_custom_call.1} parent=294 // loop_header
          %s698 = sphi 0, %s702
          %p699 = scmp.ge.s32.totalorder %s698, 2
        $region298: #{tpu_custom_call.1} parent=294 // loop_header_branch
          %701 = sbr.rel (%p699) target = $region302
        $region299: #{tpu_custom_call.1} parent=294 // loop_body
          %s703 = smul.u32 %s698, 8
          %s704 = sadd.s32 %s695, %s703
          %s705 = sld [smem:[#allocation5 + %s704]]
          %s706 = sadd.s32 %s696, %s703
          %s707 = scalar_lea.vmem %s1, %s705
          %s708 = scalar_lea.vmem [#allocation2], %s706
          %s709 = scalar_lea.sflag [#allocation3], %s694
          %p711 = scmp.lt.u32.totalorder 1, 8
          %p712 = pneg %p711
          // Predicated region
          $region303: #{tpu_custom_call.1} parent=299 // pred_check
            _
          $region304: #{tpu_custom_call.1} parent=299 // pred_check_branch
            %714 = sbr.rel (%p711) target = $region306
          $region305: #{tpu_custom_call.1} parent=299 // pred_region
            %s729 = sand.u32 1, 7
            %p730 = scmp.eq.s32.totalorder %s729, 0
            %p731 = pneg %p730
            // Predicated region
            $region318: #{tpu_custom_call.1} parent=305 // pred_check
              _
            $region319: #{tpu_custom_call.1} parent=305 // pred_check_branch
              %733 = sbr.rel (%p730) target = $region321
            $region320: #{tpu_custom_call.1} parent=305 // pred_region
              %s734 = sand.u32 1, 7
              %s735 = ssub.s32 1, %s734
              %s736 = scalar_lea.vmem %s707, %s735
              %s737 = ssub.s32 1, %s734
              %s738 = scalar_lea.vmem %s708, %s737 [#allocation2]
              %s739 = sshllo.u32 0, %s734
              loop: start=0, step=1, limit=1
              $region322: #{tpu_custom_call.1} parent=320 // loop_pre_header
                _
              $region323: #{tpu_custom_call.1} parent=320 // loop_header
                %s741 = sphi 0, %s745
                %p742 = scmp.ge.s32.totalorder %s741, 1
                %s746 = sphi %s736, %s736
                %s747 = sphi %s738, %s738
              $region324: #{tpu_custom_call.1} parent=320 // loop_header_branch
                %744 = sbr.rel (%p742) target = $region328
              $region325: #{tpu_custom_call.1} parent=320 // loop_body
                %v748 = vld [vmem:[%s746] sm:%s739]
                %749 = vst [vmem:[%s747] sm:%s739] %v748
              $region326: #{tpu_custom_call.1} parent=320 // loop_footer
                %s745 = sadd.s32 1, %s741
              $region327: #{tpu_custom_call.1} parent=320 // loop_footer_branch
                %740 = sbr.rel target = $region323
              $region328: #{tpu_custom_call.1} parent=320 // loop_exit
                _
            $region321: #{tpu_custom_call.1} parent=305 // pred_fallthru
              _
          $region306: #{tpu_custom_call.1} parent=299 // pred_fallthru
            _
          // Predicated region
          $region307: #{tpu_custom_call.1} parent=299 // pred_check
            %p715 = pneg %p711
          $region308: #{tpu_custom_call.1} parent=299 // pred_check_branch
            %717 = sbr.rel (%p715) target = $region310
          $region309: #{tpu_custom_call.1} parent=299 // pred_region
            %s718 = sshllo.u32 0, 1
            loop: start=0, step=1, limit=1
            $region311: #{tpu_custom_call.1} parent=309 // loop_pre_header
              _
            $region312: #{tpu_custom_call.1} parent=309 // loop_header
              %s720 = sphi 0, %s724
              %p721 = scmp.ge.s32.totalorder %s720, 1
              %s725 = sphi %s707, %s707
              %s726 = sphi %s708, %s708
            $region313: #{tpu_custom_call.1} parent=309 // loop_header_branch
              %723 = sbr.rel (%p721) target = $region317
            $region314: #{tpu_custom_call.1} parent=309 // loop_body
              %v727 = vld [vmem:[%s725] sm:%s718]
              %728 = vst [vmem:[%s726] sm:%s718] %v727
            $region315: #{tpu_custom_call.1} parent=309 // loop_footer
              %s724 = sadd.s32 1, %s720
            $region316: #{tpu_custom_call.1} parent=309 // loop_footer_branch
              %719 = sbr.rel target = $region312
            $region317: #{tpu_custom_call.1} parent=309 // loop_exit
              _
          $region310: #{tpu_custom_call.1} parent=299 // pred_fallthru
            _
          // Predicated region
          $region329: #{tpu_custom_call.1} parent=299 // pred_check
            _
          $region330: #{tpu_custom_call.1} parent=299 // pred_check_branch
            %752 = sbr.rel (0) target = $region332
          $region331: #{tpu_custom_call.1} parent=299 // pred_region
            %753 = vsyncadd %s709, 16
          $region332: #{tpu_custom_call.1} parent=299 // pred_fallthru
            _
          %s754 = sadd.s32 %s703, 1
          %s755 = sadd.s32 %s695, %s754
          %s756 = sld [smem:[#allocation5 + %s755]]
          %s757 = sadd.s32 %s696, %s754
          %s758 = scalar_lea.vmem %s1, %s756
          %s759 = scalar_lea.vmem [#allocation2], %s757
          %p761 = scmp.lt.u32.totalorder 1, 8
          %p762 = pneg %p761
          // Predicated region
          $region333: #{tpu_custom_call.1} parent=299 // pred_check
            _
          $region334: #{tpu_custom_call.1} parent=299 // pred_check_branch
            %764 = sbr.rel (%p761) target = $region336
          $region335: #{tpu_custom_call.1} parent=299 // pred_region
            %s779 = sand.u32 1, 7
            %p780 = scmp.eq.s32.totalorder %s779, 0
            %p781 = pneg %p780
            // Predicated region
            $region348: #{tpu_custom_call.1} parent=335 // pred_check
              _
            $region349: #{tpu_custom_call.1} parent=335 // pred_check_branch
              %783 = sbr.rel (%p780) target = $region351
            $region350: #{tpu_custom_call.1} parent=335 // pred_region
              %s784 = sand.u32 1, 7
              %s785 = ssub.s32 1, %s784
              %s786 = scalar_lea.vmem %s758, %s785
              %s787 = ssub.s32 1, %s784
              %s788 = scalar_lea.vmem %s759, %s787 [#allocation2]
              %s789 = sshllo.u32 0, %s784
              loop: start=0, step=1, limit=1
              $region352: #{tpu_custom_call.1} parent=350 // loop_pre_header
                _
              $region353: #{tpu_custom_call.1} parent=350 // loop_header
                %s791 = sphi 0, %s795
                %p792 = scmp.ge.s32.totalorder %s791, 1
                %s796 = sphi %s786, %s786
                %s797 = sphi %s788, %s788
              $region354: #{tpu_custom_call.1} parent=350 // loop_header_branch
                %794 = sbr.rel (%p792) target = $region358
              $region355: #{tpu_custom_call.1} parent=350 // loop_body
                %v798 = vld [vmem:[%s796] sm:%s789]
                %799 = vst [vmem:[%s797] sm:%s789] %v798
              $region356: #{tpu_custom_call.1} parent=350 // loop_footer
                %s795 = sadd.s32 1, %s791
              $region357: #{tpu_custom_call.1} parent=350 // loop_footer_branch
                %790 = sbr.rel target = $region353
              $region358: #{tpu_custom_call.1} parent=350 // loop_exit
                _
            $region351: #{tpu_custom_call.1} parent=335 // pred_fallthru
              _
          $region336: #{tpu_custom_call.1} parent=299 // pred_fallthru
            _
          // Predicated region
          $region337: #{tpu_custom_call.1} parent=299 // pred_check
            %p765 = pneg %p761
          $region338: #{tpu_custom_call.1} parent=299 // pred_check_branch
            %767 = sbr.rel (%p765) target = $region340
          $region339: #{tpu_custom_call.1} parent=299 // pred_region
            %s768 = sshllo.u32 0, 1
            loop: start=0, step=1, limit=1
            $region341: #{tpu_custom_call.1} parent=339 // loop_pre_header
              _
            $region342: #{tpu_custom_call.1} parent=339 // loop_header
              %s770 = sphi 0, %s774
              %p771 = scmp.ge.s32.totalorder %s770, 1
              %s775 = sphi %s758, %s758
              %s776 = sphi %s759, %s759
            $region343: #{tpu_custom_call.1} parent=339 // loop_header_branch
              %773 = sbr.rel (%p771) target = $region347
            $region344: #{tpu_custom_call.1} parent=339 // loop_body
              %v777 = vld [vmem:[%s775] sm:%s768]
              %778 = vst [vmem:[%s776] sm:%s768] %v777
            $region345: #{tpu_custom_call.1} parent=339 // loop_footer
              %s774 = sadd.s32 1, %s770
            $region346: #{tpu_custom_call.1} parent=339 // loop_footer_branch
              %769 = sbr.rel target = $region342
            $region347: #{tpu_custom_call.1} parent=339 // loop_exit
              _
          $region340: #{tpu_custom_call.1} parent=299 // pred_fallthru
            _
          // Predicated region
          $region359: #{tpu_custom_call.1} parent=299 // pred_check
            _
          $region360: #{tpu_custom_call.1} parent=299 // pred_check_branch
            %802 = sbr.rel (0) target = $region362
          $region361: #{tpu_custom_call.1} parent=299 // pred_region
            %803 = vsyncadd %s709, 16
          $region362: #{tpu_custom_call.1} parent=299 // pred_fallthru
            _
          %s804 = sadd.s32 %s703, 2
          %s805 = sadd.s32 %s695, %s804
          %s806 = sld [smem:[#allocation5 + %s805]]
          %s807 = sadd.s32 %s696, %s804
          %s808 = scalar_lea.vmem %s1, %s806
          %s809 = scalar_lea.vmem [#allocation2], %s807
          %p811 = scmp.lt.u32.totalorder 1, 8
          %p812 = pneg %p811
          // Predicated region
          $region363: #{tpu_custom_call.1} parent=299 // pred_check
            _
          $region364: #{tpu_custom_call.1} parent=299 // pred_check_branch
            %814 = sbr.rel (%p811) target = $region366
          $region365: #{tpu_custom_call.1} parent=299 // pred_region
            %s829 = sand.u32 1, 7
            %p830 = scmp.eq.s32.totalorder %s829, 0
            %p831 = pneg %p830
            // Predicated region
            $region378: #{tpu_custom_call.1} parent=365 // pred_check
              _
            $region379: #{tpu_custom_call.1} parent=365 // pred_check_branch
              %833 = sbr.rel (%p830) target = $region381
            $region380: #{tpu_custom_call.1} parent=365 // pred_region
              %s834 = sand.u32 1, 7
              %s835 = ssub.s32 1, %s834
              %s836 = scalar_lea.vmem %s808, %s835
              %s837 = ssub.s32 1, %s834
              %s838 = scalar_lea.vmem %s809, %s837 [#allocation2]
              %s839 = sshllo.u32 0, %s834
              loop: start=0, step=1, limit=1
              $region382: #{tpu_custom_call.1} parent=380 // loop_pre_header
                _
              $region383: #{tpu_custom_call.1} parent=380 // loop_header
                %s841 = sphi 0, %s845
                %p842 = scmp.ge.s32.totalorder %s841, 1
                %s846 = sphi %s836, %s836
                %s847 = sphi %s838, %s838
              $region384: #{tpu_custom_call.1} parent=380 // loop_header_branch
                %844 = sbr.rel (%p842) target = $region388
              $region385: #{tpu_custom_call.1} parent=380 // loop_body
                %v848 = vld [vmem:[%s846] sm:%s839]
                %849 = vst [vmem:[%s847] sm:%s839] %v848
              $region386: #{tpu_custom_call.1} parent=380 // loop_footer
                %s845 = sadd.s32 1, %s841
              $region387: #{tpu_custom_call.1} parent=380 // loop_footer_branch
                %840 = sbr.rel target = $region383
              $region388: #{tpu_custom_call.1} parent=380 // loop_exit
                _
            $region381: #{tpu_custom_call.1} parent=365 // pred_fallthru
              _
          $region366: #{tpu_custom_call.1} parent=299 // pred_fallthru
            _
          // Predicated region
          $region367: #{tpu_custom_call.1} parent=299 // pred_check
            %p815 = pneg %p811
          $region368: #{tpu_custom_call.1} parent=299 // pred_check_branch
            %817 = sbr.rel (%p815) target = $region370
          $region369: #{tpu_custom_call.1} parent=299 // pred_region
            %s818 = sshllo.u32 0, 1
            loop: start=0, step=1, limit=1
            $region371: #{tpu_custom_call.1} parent=369 // loop_pre_header
              _
            $region372: #{tpu_custom_call.1} parent=369 // loop_header
              %s820 = sphi 0, %s824
              %p821 = scmp.ge.s32.totalorder %s820, 1
              %s825 = sphi %s808, %s808
              %s826 = sphi %s809, %s809
            $region373: #{tpu_custom_call.1} parent=369 // loop_header_branch
              %823 = sbr.rel (%p821) target = $region377
            $region374: #{tpu_custom_call.1} parent=369 // loop_body
              %v827 = vld [vmem:[%s825] sm:%s818]
              %828 = vst [vmem:[%s826] sm:%s818] %v827
            $region375: #{tpu_custom_call.1} parent=369 // loop_footer
              %s824 = sadd.s32 1, %s820
            $region376: #{tpu_custom_call.1} parent=369 // loop_footer_branch
              %819 = sbr.rel target = $region372
            $region377: #{tpu_custom_call.1} parent=369 // loop_exit
              _
          $region370: #{tpu_custom_call.1} parent=299 // pred_fallthru
            _
          // Predicated region
          $region389: #{tpu_custom_call.1} parent=299 // pred_check
            _
          $region390: #{tpu_custom_call.1} parent=299 // pred_check_branch
            %852 = sbr.rel (0) target = $region392
          $region391: #{tpu_custom_call.1} parent=299 // pred_region
            %853 = vsyncadd %s709, 16
          $region392: #{tpu_custom_call.1} parent=299 // pred_fallthru
            _
          %s854 = sadd.s32 %s703, 3
          %s855 = sadd.s32 %s695, %s854
          %s856 = sld [smem:[#allocation5 + %s855]]
          %s857 = sadd.s32 %s696, %s854
          %s858 = scalar_lea.vmem %s1, %s856
          %s859 = scalar_lea.vmem [#allocation2], %s857
          %p861 = scmp.lt.u32.totalorder 1, 8
          %p862 = pneg %p861
          // Predicated region
          $region393: #{tpu_custom_call.1} parent=299 // pred_check
            _
          $region394: #{tpu_custom_call.1} parent=299 // pred_check_branch
            %864 = sbr.rel (%p861) target = $region396
          $region395: #{tpu_custom_call.1} parent=299 // pred_region
            %s879 = sand.u32 1, 7
            %p880 = scmp.eq.s32.totalorder %s879, 0
            %p881 = pneg %p880
            // Predicated region
            $region408: #{tpu_custom_call.1} parent=395 // pred_check
              _
            $region409: #{tpu_custom_call.1} parent=395 // pred_check_branch
              %883 = sbr.rel (%p880) target = $region411
            $region410: #{tpu_custom_call.1} parent=395 // pred_region
              %s884 = sand.u32 1, 7
              %s885 = ssub.s32 1, %s884
              %s886 = scalar_lea.vmem %s858, %s885
              %s887 = ssub.s32 1, %s884
              %s888 = scalar_lea.vmem %s859, %s887 [#allocation2]
              %s889 = sshllo.u32 0, %s884
              loop: start=0, step=1, limit=1
              $region412: #{tpu_custom_call.1} parent=410 // loop_pre_header
                _
              $region413: #{tpu_custom_call.1} parent=410 // loop_header
                %s891 = sphi 0, %s895
                %p892 = scmp.ge.s32.totalorder %s891, 1
                %s896 = sphi %s886, %s886
                %s897 = sphi %s888, %s888
              $region414: #{tpu_custom_call.1} parent=410 // loop_header_branch
                %894 = sbr.rel (%p892) target = $region418
              $region415: #{tpu_custom_call.1} parent=410 // loop_body
                %v898 = vld [vmem:[%s896] sm:%s889]
                %899 = vst [vmem:[%s897] sm:%s889] %v898
              $region416: #{tpu_custom_call.1} parent=410 // loop_footer
                %s895 = sadd.s32 1, %s891
              $region417: #{tpu_custom_call.1} parent=410 // loop_footer_branch
                %890 = sbr.rel target = $region413
              $region418: #{tpu_custom_call.1} parent=410 // loop_exit
                _
            $region411: #{tpu_custom_call.1} parent=395 // pred_fallthru
              _
          $region396: #{tpu_custom_call.1} parent=299 // pred_fallthru
            _
          // Predicated region
          $region397: #{tpu_custom_call.1} parent=299 // pred_check
            %p865 = pneg %p861
          $region398: #{tpu_custom_call.1} parent=299 // pred_check_branch
            %867 = sbr.rel (%p865) target = $region400
          $region399: #{tpu_custom_call.1} parent=299 // pred_region
            %s868 = sshllo.u32 0, 1
            loop: start=0, step=1, limit=1
            $region401: #{tpu_custom_call.1} parent=399 // loop_pre_header
              _
            $region402: #{tpu_custom_call.1} parent=399 // loop_header
              %s870 = sphi 0, %s874
              %p871 = scmp.ge.s32.totalorder %s870, 1
              %s875 = sphi %s858, %s858
              %s876 = sphi %s859, %s859
            $region403: #{tpu_custom_call.1} parent=399 // loop_header_branch
              %873 = sbr.rel (%p871) target = $region407
            $region404: #{tpu_custom_call.1} parent=399 // loop_body
              %v877 = vld [vmem:[%s875] sm:%s868]
              %878 = vst [vmem:[%s876] sm:%s868] %v877
            $region405: #{tpu_custom_call.1} parent=399 // loop_footer
              %s874 = sadd.s32 1, %s870
            $region406: #{tpu_custom_call.1} parent=399 // loop_footer_branch
              %869 = sbr.rel target = $region402
            $region407: #{tpu_custom_call.1} parent=399 // loop_exit
              _
          $region400: #{tpu_custom_call.1} parent=299 // pred_fallthru
            _
          // Predicated region
          $region419: #{tpu_custom_call.1} parent=299 // pred_check
            _
          $region420: #{tpu_custom_call.1} parent=299 // pred_check_branch
            %902 = sbr.rel (0) target = $region422
          $region421: #{tpu_custom_call.1} parent=299 // pred_region
            %903 = vsyncadd %s709, 16
          $region422: #{tpu_custom_call.1} parent=299 // pred_fallthru
            _
          %s904 = sadd.s32 %s703, 4
          %s905 = sadd.s32 %s695, %s904
          %s906 = sld [smem:[#allocation5 + %s905]]
          %s907 = sadd.s32 %s696, %s904
          %s908 = scalar_lea.vmem %s1, %s906
          %s909 = scalar_lea.vmem [#allocation2], %s907
          %p911 = scmp.lt.u32.totalorder 1, 8
          %p912 = pneg %p911
          // Predicated region
          $region423: #{tpu_custom_call.1} parent=299 // pred_check
            _
          $region424: #{tpu_custom_call.1} parent=299 // pred_check_branch
            %914 = sbr.rel (%p911) target = $region426
          $region425: #{tpu_custom_call.1} parent=299 // pred_region
            %s929 = sand.u32 1, 7
            %p930 = scmp.eq.s32.totalorder %s929, 0
            %p931 = pneg %p930
            // Predicated region
            $region438: #{tpu_custom_call.1} parent=425 // pred_check
              _
            $region439: #{tpu_custom_call.1} parent=425 // pred_check_branch
              %933 = sbr.rel (%p930) target = $region441
            $region440: #{tpu_custom_call.1} parent=425 // pred_region
              %s934 = sand.u32 1, 7
              %s935 = ssub.s32 1, %s934
              %s936 = scalar_lea.vmem %s908, %s935
              %s937 = ssub.s32 1, %s934
              %s938 = scalar_lea.vmem %s909, %s937 [#allocation2]
              %s939 = sshllo.u32 0, %s934
              loop: start=0, step=1, limit=1
              $region442: #{tpu_custom_call.1} parent=440 // loop_pre_header
                _
              $region443: #{tpu_custom_call.1} parent=440 // loop_header
                %s941 = sphi 0, %s945
                %p942 = scmp.ge.s32.totalorder %s941, 1
                %s946 = sphi %s936, %s936
                %s947 = sphi %s938, %s938
              $region444: #{tpu_custom_call.1} parent=440 // loop_header_branch
                %944 = sbr.rel (%p942) target = $region448
              $region445: #{tpu_custom_call.1} parent=440 // loop_body
                %v948 = vld [vmem:[%s946] sm:%s939]
                %949 = vst [vmem:[%s947] sm:%s939] %v948
              $region446: #{tpu_custom_call.1} parent=440 // loop_footer
                %s945 = sadd.s32 1, %s941
              $region447: #{tpu_custom_call.1} parent=440 // loop_footer_branch
                %940 = sbr.rel target = $region443
              $region448: #{tpu_custom_call.1} parent=440 // loop_exit
                _
            $region441: #{tpu_custom_call.1} parent=425 // pred_fallthru
              _
          $region426: #{tpu_custom_call.1} parent=299 // pred_fallthru
            _
          // Predicated region
          $region427: #{tpu_custom_call.1} parent=299 // pred_check
            %p915 = pneg %p911
          $region428: #{tpu_custom_call.1} parent=299 // pred_check_branch
            %917 = sbr.rel (%p915) target = $region430
          $region429: #{tpu_custom_call.1} parent=299 // pred_region
            %s918 = sshllo.u32 0, 1
            loop: start=0, step=1, limit=1
            $region431: #{tpu_custom_call.1} parent=429 // loop_pre_header
              _
            $region432: #{tpu_custom_call.1} parent=429 // loop_header
              %s920 = sphi 0, %s924
              %p921 = scmp.ge.s32.totalorder %s920, 1
              %s925 = sphi %s908, %s908
              %s926 = sphi %s909, %s909
            $region433: #{tpu_custom_call.1} parent=429 // loop_header_branch
              %923 = sbr.rel (%p921) target = $region437
            $region434: #{tpu_custom_call.1} parent=429 // loop_body
              %v927 = vld [vmem:[%s925] sm:%s918]
              %928 = vst [vmem:[%s926] sm:%s918] %v927
            $region435: #{tpu_custom_call.1} parent=429 // loop_footer
              %s924 = sadd.s32 1, %s920
            $region436: #{tpu_custom_call.1} parent=429 // loop_footer_branch
              %919 = sbr.rel target = $region432
            $region437: #{tpu_custom_call.1} parent=429 // loop_exit
              _
          $region430: #{tpu_custom_call.1} parent=299 // pred_fallthru
            _
          // Predicated region
          $region449: #{tpu_custom_call.1} parent=299 // pred_check
            _
          $region450: #{tpu_custom_call.1} parent=299 // pred_check_branch
            %952 = sbr.rel (0) target = $region452
          $region451: #{tpu_custom_call.1} parent=299 // pred_region
            %953 = vsyncadd %s709, 16
          $region452: #{tpu_custom_call.1} parent=299 // pred_fallthru
            _
          %s954 = sadd.s32 %s703, 5
          %s955 = sadd.s32 %s695, %s954
          %s956 = sld [smem:[#allocation5 + %s955]]
          %s957 = sadd.s32 %s696, %s954
          %s958 = scalar_lea.vmem %s1, %s956
          %s959 = scalar_lea.vmem [#allocation2], %s957
          %p961 = scmp.lt.u32.totalorder 1, 8
          %p962 = pneg %p961
          // Predicated region
          $region453: #{tpu_custom_call.1} parent=299 // pred_check
            _
          $region454: #{tpu_custom_call.1} parent=299 // pred_check_branch
            %964 = sbr.rel (%p961) target = $region456
          $region455: #{tpu_custom_call.1} parent=299 // pred_region
            %s979 = sand.u32 1, 7
            %p980 = scmp.eq.s32.totalorder %s979, 0
            %p981 = pneg %p980
            // Predicated region
            $region468: #{tpu_custom_call.1} parent=455 // pred_check
              _
            $region469: #{tpu_custom_call.1} parent=455 // pred_check_branch
              %983 = sbr.rel (%p980) target = $region471
            $region470: #{tpu_custom_call.1} parent=455 // pred_region
              %s984 = sand.u32 1, 7
              %s985 = ssub.s32 1, %s984
              %s986 = scalar_lea.vmem %s958, %s985
              %s987 = ssub.s32 1, %s984
              %s988 = scalar_lea.vmem %s959, %s987 [#allocation2]
              %s989 = sshllo.u32 0, %s984
              loop: start=0, step=1, limit=1
              $region472: #{tpu_custom_call.1} parent=470 // loop_pre_header
                _
              $region473: #{tpu_custom_call.1} parent=470 // loop_header
                %s991 = sphi 0, %s995
                %p992 = scmp.ge.s32.totalorder %s991, 1
                %s996 = sphi %s986, %s986
                %s997 = sphi %s988, %s988
              $region474: #{tpu_custom_call.1} parent=470 // loop_header_branch
                %994 = sbr.rel (%p992) target = $region478
              $region475: #{tpu_custom_call.1} parent=470 // loop_body
                %v998 = vld [vmem:[%s996] sm:%s989]
                %999 = vst [vmem:[%s997] sm:%s989] %v998
              $region476: #{tpu_custom_call.1} parent=470 // loop_footer
                %s995 = sadd.s32 1, %s991
              $region477: #{tpu_custom_call.1} parent=470 // loop_footer_branch
                %990 = sbr.rel target = $region473
              $region478: #{tpu_custom_call.1} parent=470 // loop_exit
                _
            $region471: #{tpu_custom_call.1} parent=455 // pred_fallthru
              _
          $region456: #{tpu_custom_call.1} parent=299 // pred_fallthru
            _
          // Predicated region
          $region457: #{tpu_custom_call.1} parent=299 // pred_check
            %p965 = pneg %p961
          $region458: #{tpu_custom_call.1} parent=299 // pred_check_branch
            %967 = sbr.rel (%p965) target = $region460
          $region459: #{tpu_custom_call.1} parent=299 // pred_region
            %s968 = sshllo.u32 0, 1
            loop: start=0, step=1, limit=1
            $region461: #{tpu_custom_call.1} parent=459 // loop_pre_header
              _
            $region462: #{tpu_custom_call.1} parent=459 // loop_header
              %s970 = sphi 0, %s974
              %p971 = scmp.ge.s32.totalorder %s970, 1
              %s975 = sphi %s958, %s958
              %s976 = sphi %s959, %s959
            $region463: #{tpu_custom_call.1} parent=459 // loop_header_branch
              %973 = sbr.rel (%p971) target = $region467
            $region464: #{tpu_custom_call.1} parent=459 // loop_body
              %v977 = vld [vmem:[%s975] sm:%s968]
              %978 = vst [vmem:[%s976] sm:%s968] %v977
            $region465: #{tpu_custom_call.1} parent=459 // loop_footer
              %s974 = sadd.s32 1, %s970
            $region466: #{tpu_custom_call.1} parent=459 // loop_footer_branch
              %969 = sbr.rel target = $region462
            $region467: #{tpu_custom_call.1} parent=459 // loop_exit
              _
          $region460: #{tpu_custom_call.1} parent=299 // pred_fallthru
            _
          // Predicated region
          $region479: #{tpu_custom_call.1} parent=299 // pred_check
            _
          $region480: #{tpu_custom_call.1} parent=299 // pred_check_branch
            %1002 = sbr.rel (0) target = $region482
          $region481: #{tpu_custom_call.1} parent=299 // pred_region
            %1003 = vsyncadd %s709, 16
          $region482: #{tpu_custom_call.1} parent=299 // pred_fallthru
            _
          %s1004 = sadd.s32 %s703, 6
          %s1005 = sadd.s32 %s695, %s1004
          %s1006 = sld [smem:[#allocation5 + %s1005]]
          %s1007 = sadd.s32 %s696, %s1004
          %s1008 = scalar_lea.vmem %s1, %s1006
          %s1009 = scalar_lea.vmem [#allocation2], %s1007
          %p1011 = scmp.lt.u32.totalorder 1, 8
          %p1012 = pneg %p1011
          // Predicated region
          $region483: #{tpu_custom_call.1} parent=299 // pred_check
            _
          $region484: #{tpu_custom_call.1} parent=299 // pred_check_branch
            %1014 = sbr.rel (%p1011) target = $region486
          $region485: #{tpu_custom_call.1} parent=299 // pred_region
            %s1029 = sand.u32 1, 7
            %p1030 = scmp.eq.s32.totalorder %s1029, 0
            %p1031 = pneg %p1030
            // Predicated region
            $region498: #{tpu_custom_call.1} parent=485 // pred_check
              _
            $region499: #{tpu_custom_call.1} parent=485 // pred_check_branch
              %1033 = sbr.rel (%p1030) target = $region501
            $region500: #{tpu_custom_call.1} parent=485 // pred_region
              %s1034 = sand.u32 1, 7
              %s1035 = ssub.s32 1, %s1034
              %s1036 = scalar_lea.vmem %s1008, %s1035
              %s1037 = ssub.s32 1, %s1034
              %s1038 = scalar_lea.vmem %s1009, %s1037 [#allocation2]
              %s1039 = sshllo.u32 0, %s1034
              loop: start=0, step=1, limit=1
              $region502: #{tpu_custom_call.1} parent=500 // loop_pre_header
                _
              $region503: #{tpu_custom_call.1} parent=500 // loop_header
                %s1041 = sphi 0, %s1045
                %p1042 = scmp.ge.s32.totalorder %s1041, 1
                %s1046 = sphi %s1036, %s1036
                %s1047 = sphi %s1038, %s1038
              $region504: #{tpu_custom_call.1} parent=500 // loop_header_branch
                %1044 = sbr.rel (%p1042) target = $region508
              $region505: #{tpu_custom_call.1} parent=500 // loop_body
                %v1048 = vld [vmem:[%s1046] sm:%s1039]
                %1049 = vst [vmem:[%s1047] sm:%s1039] %v1048
              $region506: #{tpu_custom_call.1} parent=500 // loop_footer
                %s1045 = sadd.s32 1, %s1041
              $region507: #{tpu_custom_call.1} parent=500 // loop_footer_branch
                %1040 = sbr.rel target = $region503
              $region508: #{tpu_custom_call.1} parent=500 // loop_exit
                _
            $region501: #{tpu_custom_call.1} parent=485 // pred_fallthru
              _
          $region486: #{tpu_custom_call.1} parent=299 // pred_fallthru
            _
          // Predicated region
          $region487: #{tpu_custom_call.1} parent=299 // pred_check
            %p1015 = pneg %p1011
          $region488: #{tpu_custom_call.1} parent=299 // pred_check_branch
            %1017 = sbr.rel (%p1015) target = $region490
          $region489: #{tpu_custom_call.1} parent=299 // pred_region
            %s1018 = sshllo.u32 0, 1
            loop: start=0, step=1, limit=1
            $region491: #{tpu_custom_call.1} parent=489 // loop_pre_header
              _
            $region492: #{tpu_custom_call.1} parent=489 // loop_header
              %s1020 = sphi 0, %s1024
              %p1021 = scmp.ge.s32.totalorder %s1020, 1
              %s1025 = sphi %s1008, %s1008
              %s1026 = sphi %s1009, %s1009
            $region493: #{tpu_custom_call.1} parent=489 // loop_header_branch
              %1023 = sbr.rel (%p1021) target = $region497
            $region494: #{tpu_custom_call.1} parent=489 // loop_body
              %v1027 = vld [vmem:[%s1025] sm:%s1018]
              %1028 = vst [vmem:[%s1026] sm:%s1018] %v1027
            $region495: #{tpu_custom_call.1} parent=489 // loop_footer
              %s1024 = sadd.s32 1, %s1020
            $region496: #{tpu_custom_call.1} parent=489 // loop_footer_branch
              %1019 = sbr.rel target = $region492
            $region497: #{tpu_custom_call.1} parent=489 // loop_exit
              _
          $region490: #{tpu_custom_call.1} parent=299 // pred_fallthru
            _
          // Predicated region
          $region509: #{tpu_custom_call.1} parent=299 // pred_check
            _
          $region510: #{tpu_custom_call.1} parent=299 // pred_check_branch
            %1052 = sbr.rel (0) target = $region512
          $region511: #{tpu_custom_call.1} parent=299 // pred_region
            %1053 = vsyncadd %s709, 16
          $region512: #{tpu_custom_call.1} parent=299 // pred_fallthru
            _
          %s1054 = sadd.s32 %s703, 7
          %s1055 = sadd.s32 %s695, %s1054
          %s1056 = sld [smem:[#allocation5 + %s1055]]
          %s1057 = sadd.s32 %s696, %s1054
          %s1058 = scalar_lea.vmem %s1, %s1056
          %s1059 = scalar_lea.vmem [#allocation2], %s1057
          %p1061 = scmp.lt.u32.totalorder 1, 8
          %p1062 = pneg %p1061
          // Predicated region
          $region513: #{tpu_custom_call.1} parent=299 // pred_check
            _
          $region514: #{tpu_custom_call.1} parent=299 // pred_check_branch
            %1064 = sbr.rel (%p1061) target = $region516
          $region515: #{tpu_custom_call.1} parent=299 // pred_region
            %s1079 = sand.u32 1, 7
            %p1080 = scmp.eq.s32.totalorder %s1079, 0
            %p1081 = pneg %p1080
            // Predicated region
            $region528: #{tpu_custom_call.1} parent=515 // pred_check
              _
            $region529: #{tpu_custom_call.1} parent=515 // pred_check_branch
              %1083 = sbr.rel (%p1080) target = $region531
            $region530: #{tpu_custom_call.1} parent=515 // pred_region
              %s1084 = sand.u32 1, 7
              %s1085 = ssub.s32 1, %s1084
              %s1086 = scalar_lea.vmem %s1058, %s1085
              %s1087 = ssub.s32 1, %s1084
              %s1088 = scalar_lea.vmem %s1059, %s1087 [#allocation2]
              %s1089 = sshllo.u32 0, %s1084
              loop: start=0, step=1, limit=1
              $region532: #{tpu_custom_call.1} parent=530 // loop_pre_header
                _
              $region533: #{tpu_custom_call.1} parent=530 // loop_header
                %s1091 = sphi 0, %s1095
                %p1092 = scmp.ge.s32.totalorder %s1091, 1
                %s1096 = sphi %s1086, %s1086
                %s1097 = sphi %s1088, %s1088
              $region534: #{tpu_custom_call.1} parent=530 // loop_header_branch
                %1094 = sbr.rel (%p1092) target = $region538
              $region535: #{tpu_custom_call.1} parent=530 // loop_body
                %v1098 = vld [vmem:[%s1096] sm:%s1089]
                %1099 = vst [vmem:[%s1097] sm:%s1089] %v1098
              $region536: #{tpu_custom_call.1} parent=530 // loop_footer
                %s1095 = sadd.s32 1, %s1091
              $region537: #{tpu_custom_call.1} parent=530 // loop_footer_branch
                %1090 = sbr.rel target = $region533
              $region538: #{tpu_custom_call.1} parent=530 // loop_exit
                _
            $region531: #{tpu_custom_call.1} parent=515 // pred_fallthru
              _
          $region516: #{tpu_custom_call.1} parent=299 // pred_fallthru
            _
          // Predicated region
          $region517: #{tpu_custom_call.1} parent=299 // pred_check
            %p1065 = pneg %p1061
          $region518: #{tpu_custom_call.1} parent=299 // pred_check_branch
            %1067 = sbr.rel (%p1065) target = $region520
          $region519: #{tpu_custom_call.1} parent=299 // pred_region
            %s1068 = sshllo.u32 0, 1
            loop: start=0, step=1, limit=1
            $region521: #{tpu_custom_call.1} parent=519 // loop_pre_header
              _
            $region522: #{tpu_custom_call.1} parent=519 // loop_header
              %s1070 = sphi 0, %s1074
              %p1071 = scmp.ge.s32.totalorder %s1070, 1
              %s1075 = sphi %s1058, %s1058
              %s1076 = sphi %s1059, %s1059
            $region523: #{tpu_custom_call.1} parent=519 // loop_header_branch
              %1073 = sbr.rel (%p1071) target = $region527
            $region524: #{tpu_custom_call.1} parent=519 // loop_body
              %v1077 = vld [vmem:[%s1075] sm:%s1068]
              %1078 = vst [vmem:[%s1076] sm:%s1068] %v1077
            $region525: #{tpu_custom_call.1} parent=519 // loop_footer
              %s1074 = sadd.s32 1, %s1070
            $region526: #{tpu_custom_call.1} parent=519 // loop_footer_branch
              %1069 = sbr.rel target = $region522
            $region527: #{tpu_custom_call.1} parent=519 // loop_exit
              _
          $region520: #{tpu_custom_call.1} parent=299 // pred_fallthru
            _
          // Predicated region
          $region539: #{tpu_custom_call.1} parent=299 // pred_check
            _
          $region540: #{tpu_custom_call.1} parent=299 // pred_check_branch
            %1102 = sbr.rel (0) target = $region542
          $region541: #{tpu_custom_call.1} parent=299 // pred_region
            %1103 = vsyncadd %s709, 16
          $region542: #{tpu_custom_call.1} parent=299 // pred_fallthru
            _
        $region300: #{tpu_custom_call.1} parent=294 // loop_footer
          %s702 = sadd.s32 1, %s698
        $region301: #{tpu_custom_call.1} parent=294 // loop_footer_branch
          %697 = sbr.rel target = $region297
        $region302: #{tpu_custom_call.1} parent=294 // loop_exit
          _
      $region295: #{tpu_custom_call.1} parent=39 // pred_fallthru
        _
      %p1104 = scmp.lt.s32.totalorder %s29, 0
      %s1105 = ssub.s32 0, %s29
      %s1106 = scalar_select %p1104, %s1105, %s29
      %s1107 = sand.u32 %s1106, 1
      %s1108 = ssub.s32 0, %s1107
      %s1109 = scalar_select %p1104, %s1108, %s1107
      %p1110 = scmp.ne.s32.totalorder %s1109, 0
      %p1111 = scmp.lt.s32.totalorder %s1109, 0
      %p1112 = pnand %p1111, %p1110
      %p1113 = pneg %p1112
      %s1114 = sadd.s32 %s1109, 2
      %s1115 = scalar_select %p1113, %s1114, %s1109
      %s1116 = smul.u32 %s1115, 16
      %s1117 = scalar_lea.sflag [#allocation3], %s1115
      %s1118 = smul.u32 16, 1
      %s1119 = sshll.u32 %s1118, 4
      %1120 = dma.done %s1117, %s1119
      %s1121 = scalar_lea.vmem [#allocation2], %s1116
      %v1122 = vld [vmem:[%s1121] sm:$0xff]
      %v1123 = vld [vmem:[%s1121 + $0x8] sm:$0xff]
      %v1124 = vld [vmem:[%s3] sm:$0xff]
      %v1125 = vld [vmem:[%s3 + $0x8] sm:$0xff]
      %v1126 = vadd.f32 %v1122, %v1124
      %v1127 = vadd.f32 %v1123, %v1125
      %v1128 = vld [vmem:[%s258] sm:$0xff]
      %v1129 = vld [vmem:[%s258 + $0x8] sm:$0xff]
      %v1130 = vld [vmem:[%s4] sm:$0x1]
      %vm1131 = vcmp.eq.s32.totalorder %v1128, 1
      %vm1132 = vcmp.eq.s32.totalorder %v1129, 1
      %v1133 = vld [vmem:[%s4 + $0x1] sm:$0x1]
      %v1134 = vsel %vm1131, 1, 0
      %v1135 = vsel %vm1132, 1, 0
      %1136 = vset.pattern.permute.xlu0 0
      %1137 = vperm.xlu0 %1136, %v1134
      %v1138 = vpop.permute.xlu0 %1137
      %1139 = vset.pattern.permute.xlu0 0
      %1140 = vperm.xlu0 %1139, %v1135
      %v1141 = vpop.permute.xlu0 %1140
      %vm1142 = vcmp.eq.s32.totalorder %v1138, 1
      %vm1143 = vcmp.eq.s32.totalorder %v1141, 1
      %v1144 = vlaneseq
      %v1145 = vshrl.u32 %v1144, 7
      %v1146 = vsub.s32 0, %v1145
      %v1147 = vrot.slane %v1133, %v1146
      %v1148 = vlaneseq
      %v1149 = vshrl.u32 %v1148, 7
      %v1150 = vsub.s32 0, %v1149
      %v1151 = vrot.slane %v1130, %v1150
      %v1152 = vsel %vm1142, %v1147, %v1151
      %v1153 = vsel %vm1143, %v1147, %v1151
      %v1154 = vadd.f32 %v1126, %v1152
      %v1155 = vadd.f32 %v1127, %v1153
      %vm1156 = vcmask 261120
      %v1157 = vsel %vm1156, %v1154, 0.0
      %1158 = vadd.xlane.f32.xlu0 %v1157
      %v1159 = vpop.xlane.xlu0 %1158
      %v1160 = vsel %vm1156, %v1155, 0.0
      %1161 = vadd.xlane.f32.xlu0 %v1160
      %v1162 = vpop.xlane.xlu0 %1161
      %v1163 = vmul.f32 %v1159, 0.03125
      %v1164 = vmul.f32 %v1162, 0.03125
      %v1165 = vsub.f32 %v1154, %v1163
      %v1166 = vsub.f32 %v1155, %v1164
      %v1167 = vmul.f32 %v1165, %v1165
      %v1168 = vmul.f32 %v1166, %v1166
      %v1169 = vsel %vm1156, %v1167, 0.0
      %1170 = vadd.xlane.f32.xlu0 %v1169
      %v1171 = vpop.xlane.xlu0 %1170
      %v1172 = vsel %vm1156, %v1168, 0.0
      %1173 = vadd.xlane.f32.xlu0 %v1172
      %v1174 = vpop.xlane.xlu0 %1173
      %v1175 = vmul.f32 %v1171, 0.03125
      %v1176 = vmul.f32 %v1174, 0.03125
      %v1177 = vadd.f32 %v1175, 1e-12
      %v1178 = vadd.f32 %v1176, 1e-12
      %v1179 = vrsqrt.pop %v1177
      %v1180 = vrsqrt.pop %v1178
      %v1181 = vmul.f32 %v1165, %v1179
      %v1182 = vmul.f32 %v1166, %v1180
      %v1183 = vld [vmem:[%s5] sm:$0x1]
      %v1185 = vlaneseq
      %v1186 = vshrl.u32 %v1185, 7
      %v1187 = vsub.s32 0, %v1186
      %v1188 = vrot.slane %v1183, %v1187
      %v1190 = vmul.f32 %v1181, %v1188
      %v1191 = vmul.f32 %v1182, %v1188
      %v1192 = vld [vmem:[%s6] sm:$0x1]
      %v1194 = vlaneseq
      %v1195 = vshrl.u32 %v1194, 7
      %v1196 = vsub.s32 0, %v1195
      %v1197 = vrot.slane %v1192, %v1196
      %v1199 = vadd.f32 %v1190, %v1197
      %v1200 = vadd.f32 %v1191, %v1197
      %1201 = vst.msk [vmem:[%s268] sm:$0xff] %vm1156, %v1199
      %1202 = vst.msk [vmem:[%s268 + $0x8] sm:$0xff] %vm1156, %v1200
      %s1203 = smul.u32 %s28, 2
      %s1204 = sadd.s32 %s1203, %s29
      %s1205 = smul.u32 2, %s1204
      %p1206 = scmp.lt.s32.totalorder %s1205, 7
      %s1207 = scalar_select %p1206, %s1205, 7
      %s1208 = smul.addr %s1207, 8
      %s1209 = scalar_lea.vmem %s7, %s1208
      // Predicated region
      $region543: #{tpu_custom_call.1} parent=39 // pred_check
        %p1210 = pneg %p172
      $region544: #{tpu_custom_call.1} parent=39 // pred_check_branch
        %1212 = sbr.rel (%p1210) target = $region546
      $region545: #{tpu_custom_call.1} parent=39 // pred_region
        %s1213 = smul.u32 %s28, 2
        %s1214 = sadd.s32 %s1213, %s29
        %s1215 = smul.u32 2, %s1214
      $region546: #{tpu_custom_call.1} parent=39 // pred_fallthru
        _
    $region40: #{tpu_custom_call.1} parent=5 // pred_fallthru
      _
    %p1216 = scmp.le.s32.totalorder 2, %s19
    // Predicated region
    $region547: #{tpu_custom_call.1} parent=5 // pred_check
      %p1217 = pneg %p1216
    $region548: #{tpu_custom_call.1} parent=5 // pred_check_branch
      %1219 = sbr.rel (%p1217) target = $region550
    $region549: #{tpu_custom_call.1} parent=5 // pred_region
      %s1220 = ssub.s32 %s19, 2
      // Predicated region
      $region551: #{tpu_custom_call.1} parent=549 // pred_check
        %p1221 = pneg %p178
      $region552: #{tpu_custom_call.1} parent=549 // pred_check_branch
        %1223 = sbr.rel (%p1221) target = $region554
      $region553: #{tpu_custom_call.1} parent=549 // pred_region
        %s1224 = smul.u32 %s30, 2
        %s1225 = sadd.s32 %s1224, %s31
        %s1226 = smul.u32 2, %s1225
        %p1227 = scmp.lt.s32.totalorder %s1226, 7
        %s1228 = scalar_select %p1227, %s1226, 7
        %s1229 = smul.addr %s1228, 8
        %s1230 = scalar_lea.vmem %s7, %s1229
      $region554: #{tpu_custom_call.1} parent=549 // pred_fallthru
        _
    $region550: #{tpu_custom_call.1} parent=5 // pred_fallthru
      _
  $region6: #{tpu_custom_call.1} parent=0 // loop_footer
    %s23 = sadd.s32 1, %s19
  $region7: #{tpu_custom_call.1} parent=0 // loop_footer_branch
    %18 = sbr.rel target = $region3
  $region8: #{tpu_custom_call.1} parent=0 // loop_exit
    _
  %1231 = vsyncmov [#allocation3]
  %s1232 = vpop.sfrf %1231
  %p1233 = scmp.eq.s32.totalorder %s1232, 0
  %p1234 = pneg %p1233
  %1236 = shalt.err (%p1234)
  %s1237 = scalar_lea.sflag [#allocation3], 1
  %1238 = vsyncmov %s1237
  %s1239 = vpop.sfrf %1238
  %p1240 = scmp.eq.s32.totalorder %s1239, 0
  %p1241 = pneg %p1240
  %1243 = shalt.err (%p1241)

</llo_original>
